<compile_context>
chip_gen: v6e
topology: v6e:2x2x1
jax: 0.10.0
libtpu: 0.0.40
codegen_flags: <defaults>
</compile_context>

<pallas_src>
import functools

import jax
import jax.numpy as jnp
from jax.experimental import pallas as pl
from jax.experimental.pallas import tpu as pltpu


# ------------------------------ fused forward kernel --------------------------------
def sentence_attention_fused_kernel(
        x_ref,          # (L*B, D)   packed sentence vectors, time-major rows (t*B + b)
        wih_ref,        # (D, 6H)    [wih_fwd | wih_bwd] pre-transposed, gate order (r,z,n)
        bih_ref,        # (1, 6H)
        whh_f_ref,      # (H, 3H)
        bhh_f_ref,      # (1, 3H)
        whh_b_ref,      # (H, 3H)
        bhh_b_ref,      # (1, 3H)
        watt_ref,       # (2H, A)    sentence_attention weight, pre-transposed
        batt_ref,       # (1, A)
        cvec_ref,       # (1, A)     sentence_context_vector
        dv_ref,         # (B, L*2H)  documents_vector, lane-dense flattened
        alphas_ref,     # (B, L*A)   sentence_alphas, lane-dense flattened
        *, B, L, H, A):
    D2 = 2 * H

    # ---- hoisted input projection: both directions, all timesteps, ONE matmul ----
    x = x_ref[...]                                                    # (L*B, D)
    gx_all = jnp.dot(x, wih_ref[...],
                     preferred_element_type=jnp.float32) + bih_ref[...]   # (L*B, 6H)

    whh_f, bhh_f = whh_f_ref[...], bhh_f_ref[...]
    whh_b, bhh_b = whh_b_ref[...], bhh_b_ref[...]

    def gru_step(gx, h_prev, whh, bhh):
        # PyTorch GRU: r,z,n gate order; n = tanh(gx_n + r*(W_hn h + b_hn))
        gh = jnp.dot(h_prev, whh, preferred_element_type=jnp.float32) + bhh
        r = jax.nn.sigmoid(gx[:, 0:H] + gh[:, 0:H])
        z = jax.nn.sigmoid(gx[:, H:2 * H] + gh[:, H:2 * H])
        n = jnp.tanh(gx[:, 2 * H:3 * H] + r * gh[:, 2 * H:3 * H])
        return (1.0 - z) * n + z * h_prev

    # ---- interleaved forward / backward recurrences (independent chains) ----
    hf = [None] * L
    hb = [None] * L
    h_f = jnp.zeros((B, H), jnp.float32)
    h_b = jnp.zeros((B, H), jnp.float32)
    for t in range(L):
        tb = L - 1 - t
        gx_f = gx_all[t * B:(t + 1) * B, 0:3 * H]
        gx_b = gx_all[tb * B:(tb + 1) * B, 3 * H:6 * H]
        h_f = gru_step(gx_f, h_f, whh_f, bhh_f)
        h_b = gru_step(gx_b, h_b, whh_b, bhh_b)
        hf[t] = h_f
        hb[tb] = h_b

    # per-sentence bidirectional states: hs[t] = [h_fwd(t) | h_bwd(t)]  -> (B, 2H)
    hs = [jnp.concatenate([hf[t], hb[t]], axis=-1) for t in range(L)]

    # ---- attention: one (L*B, 2H) @ (2H, A) MXU matmul ----
    h_all = jnp.concatenate(hs, axis=0)                               # (L*B, 2H)
    att = jnp.dot(h_all, watt_ref[...],
                  preferred_element_type=jnp.float32) + batt_ref[...]
    att = cvec_ref[...] * jnp.tanh(att)                               # (L*B, A)

    m = jnp.max(att, keepdims=True)                                   # global max (matches .max())
    e = jnp.exp(att - m)                                              # (L*B, A)

    # per-document softmax denominator (sum over sentence dim)
    e_t = [e[t * B:(t + 1) * B, :] for t in range(L)]                 # L x (B, A)
    denom = e_t[0]
    for t in range(1, L):
        denom = denom + e_t[t]
    inv_denom = pl.reciprocal(denom, approx=True)                     # (B, A) on EUP
    a_t = [e_t[t] * inv_denom for t in range(L)]                      # alphas per sentence t

    # lane-dense alphas slab: (B, L*A)
    alphas_ref[...] = jnp.concatenate(a_t, axis=-1)

    # ---- documents * alphas.unsqueeze(2) then sum(dim=1) (valid since B==L, A==2H):
    #      dv[p, l, d] = sum_j h[j, l, d] * alphas[p, j, d]
    dv_l = []
    for l in range(L):
        acc = a_t[0] * hs[l][0:1, :]                                  # row-broadcast over docs
        for j in range(1, L):
            acc = acc + a_t[j] * hs[l][j:j + 1, :]
        dv_l.append(acc)                                              # (B, 2H)
    dv_ref[...] = jnp.concatenate(dv_l, axis=-1)                      # (B, L*2H) lane-dense


# ----------------------------------- wrapper ----------------------------------------
def sentence_attention_forward(packed_data, n_docs, n_sentences, params):
    """packed_data: (L*B, 2*word_rnn_size) time-major packed sentence vectors."""
    B, L = n_docs, n_sentences
    total, D = packed_data.shape
    H = params["whh_f"].shape[1]
    A = params["w_att"].shape[0]
    assert total == B * L
    assert B == L and A == 2 * H, (
        "documents * alphas.unsqueeze(2) in the reference module only broadcasts when "
        "batch == n_sentences and sentence_att_size == 2*sentence_rnn_size")

    # one-time weight prep (outside the kernel): fuse both directions' x-projections
    wih_cat = jnp.concatenate([params["wih_f"].T, params["wih_b"].T], axis=1)   # (D, 6H)
    bih_cat = jnp.concatenate([params["bih_f"], params["bih_b"]])[None, :]      # (1, 6H)

    kernel = functools.partial(sentence_attention_fused_kernel, B=B, L=L, H=H, A=A)
    vmem = pl.BlockSpec(memory_space=pltpu.MemorySpace.VMEM)

    dv_flat, alphas_flat = pl.pallas_call(
        kernel,
        out_shape=(jax.ShapeDtypeStruct((B, L * 2 * H), jnp.float32),
                   jax.ShapeDtypeStruct((B, L * A), jnp.float32)),
        in_specs=[vmem] * 10,
        out_specs=(vmem, vmem),
    )(packed_data, wih_cat, bih_cat,
      params["whh_f"].T, params["bhh_f"][None, :],
      params["whh_b"].T, params["bhh_b"][None, :],
      params["w_att"].T, params["b_att"][None, :], params["cvec"])

    dv = dv_flat.reshape(B, L, 2 * H)
    alphas = alphas_flat.reshape(B, L, A)
    return dv, alphas


# -------------------------- parameter init (deterministic) --------------------------
def init_params(key, word_rnn_size, sentence_rnn_size, sentence_att_size):
    D = 2 * word_rnn_size
    H = sentence_rnn_size
    A = sentence_att_size
    ks = jax.random.split(key, 11)

    def u(k, shape, s=0.1):
        return jax.random.uniform(k, shape, jnp.float32, -s, s)

    return dict(
        # GRU layer 0, forward & reverse directions (PyTorch layout, gate order r,z,n)
        wih_f=u(ks[0], (3 * H, D)), whh_f=u(ks[1], (3 * H, H)),
        bih_f=u(ks[2], (3 * H,)),   bhh_f=u(ks[3], (3 * H,)),
        wih_b=u(ks[4], (3 * H, D)), whh_b=u(ks[5], (3 * H, H)),
        bih_b=u(ks[6], (3 * H,)),   bhh_b=u(ks[7], (3 * H,)),
        # sentence_attention Linear
        w_att=u(ks[8], (A, 2 * H)), b_att=u(ks[9], (A,)),
        # sentence_context_vector ~ U(-0.1, 0.1)
        cvec=u(ks[10], (1, A)),
    )


# ------------------------------ pure-JAX reference ----------------------------------
def reference_forward(packed_data, B, L, params):
    D = packed_data.shape[1]
    H = params["whh_f"].shape[1]
    x = packed_data.reshape(L, B, D)

    def gru_dir(wih, whh, bih, bhh, reverse):
        def step(h, xt):
            gx = xt @ wih.T + bih
            gh = h @ whh.T + bhh
            r = jax.nn.sigmoid(gx[:, :H] + gh[:, :H])
            z = jax.nn.sigmoid(gx[:, H:2 * H] + gh[:, H:2 * H])
            n = jnp.tanh(gx[:, 2 * H:] + r * gh[:, 2 * H:])
            hn = (1.0 - z) * n + z * h
            return hn, hn
        xs = x[::-1] if reverse else x
        _, hs = jax.lax.scan(step, jnp.zeros((B, H), jnp.float32), xs)
        return hs[::-1] if reverse else hs

    hf = gru_dir(params["wih_f"], params["whh_f"], params["bih_f"], params["bhh_f"], False)
    hb = gru_dir(params["wih_b"], params["whh_b"], params["bih_b"], params["bhh_b"], True)
    h = jnp.transpose(jnp.concatenate([hf, hb], axis=-1), (1, 0, 2))   # (B, L, 2H)

    att = jnp.tanh(h @ params["w_att"].T + params["b_att"])
    att = params["cvec"] * att
    e = jnp.exp(att - jnp.max(att))
    alphas = e / jnp.sum(e, axis=1, keepdims=True)
    dv = jnp.sum(h[None, :, :, :] * alphas[:, :, None, :], axis=1)
    return dv, alphas


if __name__ == "__main__":
    word_rnn_size = 16          # -> GRU input D = 32
    sentence_rnn_size = 16      # -> 2H = 32
    sentence_att_size = 32      # must equal 2H for the module's final broadcast
    B = 4                       # documents
    L = 4                       # sentences per document (must equal B, see note)

    key = jax.random.PRNGKey(0)
    kx, kp = jax.random.split(key)
    params = init_params(kp, word_rnn_size, sentence_rnn_size, sentence_att_size)
    # packed sentences_word_attention: (total = L*B, 2*word_rnn_size)
    packed = jax.random.normal(kx, (B * L, 2 * word_rnn_size), jnp.float32)

    dv, alphas = sentence_attention_forward(packed, B, L, params)
    jax.block_until_ready((dv, alphas))

    dv_ref, al_ref = reference_forward(packed, B, L, params)
    assert dv.shape == (B, L, 2 * sentence_rnn_size)
    assert alphas.shape == (B, L, sentence_att_size)
    ok = bool(jnp.allclose(dv, dv_ref, atol=2e-3, rtol=2e-3)
              and jnp.allclose(alphas, al_ref, atol=2e-3, rtol=2e-3))
    if not ok:
        raise SystemExit("mismatch vs pure-JAX reference")
    print("KERNEL_OK")
</pallas_src>

<mosaic_0001>
module attributes {stable_mosaic.version = 11 : i64} {
  func.func @sentence_attention_fused_kernel(%arg0: memref<16x32xf32, #tpu.memory_space<vmem>>, %arg1: memref<32x96xf32, #tpu.memory_space<vmem>>, %arg2: memref<1x96xf32, #tpu.memory_space<vmem>>, %arg3: memref<16x48xf32, #tpu.memory_space<vmem>>, %arg4: memref<1x48xf32, #tpu.memory_space<vmem>>, %arg5: memref<16x48xf32, #tpu.memory_space<vmem>>, %arg6: memref<1x48xf32, #tpu.memory_space<vmem>>, %arg7: memref<32x32xf32, #tpu.memory_space<vmem>>, %arg8: memref<1x32xf32, #tpu.memory_space<vmem>>, %arg9: memref<1x32xf32, #tpu.memory_space<vmem>>, %arg10: memref<4x128xf32, #tpu.memory_space<vmem>>, %arg11: memref<4x128xf32, #tpu.memory_space<vmem>>) attributes {dimension_semantics = [], scalar_prefetch = 0 : i64, scratch_operands = 0 : i64, tpu.core_type = #tpu.core_type<tc>} {
    %c0 = arith.constant 0 : index
    %c0_0 = arith.constant 0 : index
    %0 = vector.load %arg0[%c0, %c0_0] : memref<16x32xf32, #tpu.memory_space<vmem>>, vector<16x32xf32>
    %c0_1 = arith.constant 0 : index
    %c0_2 = arith.constant 0 : index
    %1 = vector.load %arg1[%c0_1, %c0_2] : memref<32x96xf32, #tpu.memory_space<vmem>>, vector<32x96xf32>
    %cst = arith.constant dense<0.000000e+00> : vector<16x96xf32>
    %2 = tpu.matmul %0, %1, %cst {dimension_numbers = #tpu.dot_dimension_numbers<[1], [0], [0], [1], [0, 0, 1, 1], [], []>} : vector<16x32xf32>, vector<32x96xf32>, vector<16x96xf32> -> vector<16x96xf32>
    %c0_3 = arith.constant 0 : index
    %c0_4 = arith.constant 0 : index
    %3 = vector.load %arg2[%c0_3, %c0_4] : memref<1x96xf32, #tpu.memory_space<vmem>>, vector<1x96xf32>
    %4 = vector.broadcast %3 : vector<1x96xf32> to vector<16x96xf32>
    %5 = arith.addf %2, %4 : vector<16x96xf32>
    %c0_5 = arith.constant 0 : index
    %c0_6 = arith.constant 0 : index
    %6 = vector.load %arg3[%c0_5, %c0_6] : memref<16x48xf32, #tpu.memory_space<vmem>>, vector<16x48xf32>
    %c0_7 = arith.constant 0 : index
    %c0_8 = arith.constant 0 : index
    %7 = vector.load %arg4[%c0_7, %c0_8] : memref<1x48xf32, #tpu.memory_space<vmem>>, vector<1x48xf32>
    %c0_9 = arith.constant 0 : index
    %c0_10 = arith.constant 0 : index
    %8 = vector.load %arg5[%c0_9, %c0_10] : memref<16x48xf32, #tpu.memory_space<vmem>>, vector<16x48xf32>
    %c0_11 = arith.constant 0 : index
    %c0_12 = arith.constant 0 : index
    %9 = vector.load %arg6[%c0_11, %c0_12] : memref<1x48xf32, #tpu.memory_space<vmem>>, vector<1x48xf32>
    %cst_13 = arith.constant 0.000000e+00 : f32
    %10 = vector.broadcast %cst_13 : f32 to vector<4x16xf32>
    %cst_14 = arith.constant 0.000000e+00 : f32
    %11 = vector.broadcast %cst_14 : f32 to vector<4x16xf32>
    %12 = vector.extract_strided_slice %5 {offsets = [0, 0], sizes = [4, 48], strides = [1, 1]} : vector<16x96xf32> to vector<4x48xf32>
    %13 = vector.extract_strided_slice %5 {offsets = [12, 48], sizes = [4, 48], strides = [1, 1]} : vector<16x96xf32> to vector<4x48xf32>
    %cst_15 = arith.constant dense<0.000000e+00> : vector<4x48xf32>
    %14 = tpu.matmul %10, %6, %cst_15 {dimension_numbers = #tpu.dot_dimension_numbers<[1], [0], [0], [1], [0, 0, 1, 1], [], []>} : vector<4x16xf32>, vector<16x48xf32>, vector<4x48xf32> -> vector<4x48xf32>
    %15 = vector.broadcast %7 : vector<1x48xf32> to vector<4x48xf32>
    %16 = arith.addf %14, %15 : vector<4x48xf32>
    %17 = vector.extract_strided_slice %12 {offsets = [0, 0], sizes = [4, 16], strides = [1, 1]} : vector<4x48xf32> to vector<4x16xf32>
    %18 = vector.extract_strided_slice %16 {offsets = [0, 0], sizes = [4, 16], strides = [1, 1]} : vector<4x48xf32> to vector<4x16xf32>
    %19 = arith.addf %17, %18 : vector<4x16xf32>
    %20 = arith.negf %19 : vector<4x16xf32>
    %21 = math.exp %20 : vector<4x16xf32>
    %cst_16 = arith.constant 1.000000e+00 : f32
    %22 = vector.broadcast %cst_16 : f32 to vector<4x16xf32>
    %23 = arith.addf %22, %21 : vector<4x16xf32>
    %24 = arith.divf %22, %23 : vector<4x16xf32>
    %25 = vector.extract_strided_slice %12 {offsets = [0, 16], sizes = [4, 16], strides = [1, 1]} : vector<4x48xf32> to vector<4x16xf32>
    %26 = vector.extract_strided_slice %16 {offsets = [0, 16], sizes = [4, 16], strides = [1, 1]} : vector<4x48xf32> to vector<4x16xf32>
    %27 = arith.addf %25, %26 : vector<4x16xf32>
    %28 = arith.negf %27 : vector<4x16xf32>
    %29 = math.exp %28 : vector<4x16xf32>
    %cst_17 = arith.constant 1.000000e+00 : f32
    %30 = vector.broadcast %cst_17 : f32 to vector<4x16xf32>
    %31 = arith.addf %30, %29 : vector<4x16xf32>
    %32 = arith.divf %30, %31 : vector<4x16xf32>
    %33 = vector.extract_strided_slice %12 {offsets = [0, 32], sizes = [4, 16], strides = [1, 1]} : vector<4x48xf32> to vector<4x16xf32>
    %34 = vector.extract_strided_slice %16 {offsets = [0, 32], sizes = [4, 16], strides = [1, 1]} : vector<4x48xf32> to vector<4x16xf32>
    %35 = arith.mulf %24, %34 : vector<4x16xf32>
    %36 = arith.addf %33, %35 : vector<4x16xf32>
    %37 = math.tanh %36 : vector<4x16xf32>
    %cst_18 = arith.constant 1.000000e+00 : f32
    %38 = vector.broadcast %cst_18 : f32 to vector<4x16xf32>
    %39 = arith.subf %38, %32 : vector<4x16xf32>
    %40 = arith.mulf %39, %37 : vector<4x16xf32>
    %41 = arith.mulf %32, %10 : vector<4x16xf32>
    %42 = arith.addf %40, %41 : vector<4x16xf32>
    %cst_19 = arith.constant dense<0.000000e+00> : vector<4x48xf32>
    %43 = tpu.matmul %11, %8, %cst_19 {dimension_numbers = #tpu.dot_dimension_numbers<[1], [0], [0], [1], [0, 0, 1, 1], [], []>} : vector<4x16xf32>, vector<16x48xf32>, vector<4x48xf32> -> vector<4x48xf32>
    %44 = vector.broadcast %9 : vector<1x48xf32> to vector<4x48xf32>
    %45 = arith.addf %43, %44 : vector<4x48xf32>
    %46 = vector.extract_strided_slice %13 {offsets = [0, 0], sizes = [4, 16], strides = [1, 1]} : vector<4x48xf32> to vector<4x16xf32>
    %47 = vector.extract_strided_slice %45 {offsets = [0, 0], sizes = [4, 16], strides = [1, 1]} : vector<4x48xf32> to vector<4x16xf32>
    %48 = arith.addf %46, %47 : vector<4x16xf32>
    %49 = arith.negf %48 : vector<4x16xf32>
    %50 = math.exp %49 : vector<4x16xf32>
    %cst_20 = arith.constant 1.000000e+00 : f32
    %51 = vector.broadcast %cst_20 : f32 to vector<4x16xf32>
    %52 = arith.addf %51, %50 : vector<4x16xf32>
    %53 = arith.divf %51, %52 : vector<4x16xf32>
    %54 = vector.extract_strided_slice %13 {offsets = [0, 16], sizes = [4, 16], strides = [1, 1]} : vector<4x48xf32> to vector<4x16xf32>
    %55 = vector.extract_strided_slice %45 {offsets = [0, 16], sizes = [4, 16], strides = [1, 1]} : vector<4x48xf32> to vector<4x16xf32>
    %56 = arith.addf %54, %55 : vector<4x16xf32>
    %57 = arith.negf %56 : vector<4x16xf32>
    %58 = math.exp %57 : vector<4x16xf32>
    %cst_21 = arith.constant 1.000000e+00 : f32
    %59 = vector.broadcast %cst_21 : f32 to vector<4x16xf32>
    %60 = arith.addf %59, %58 : vector<4x16xf32>
    %61 = arith.divf %59, %60 : vector<4x16xf32>
    %62 = vector.extract_strided_slice %13 {offsets = [0, 32], sizes = [4, 16], strides = [1, 1]} : vector<4x48xf32> to vector<4x16xf32>
    %63 = vector.extract_strided_slice %45 {offsets = [0, 32], sizes = [4, 16], strides = [1, 1]} : vector<4x48xf32> to vector<4x16xf32>
    %64 = arith.mulf %53, %63 : vector<4x16xf32>
    %65 = arith.addf %62, %64 : vector<4x16xf32>
    %66 = math.tanh %65 : vector<4x16xf32>
    %cst_22 = arith.constant 1.000000e+00 : f32
    %67 = vector.broadcast %cst_22 : f32 to vector<4x16xf32>
    %68 = arith.subf %67, %61 : vector<4x16xf32>
    %69 = arith.mulf %68, %66 : vector<4x16xf32>
    %70 = arith.mulf %61, %11 : vector<4x16xf32>
    %71 = arith.addf %69, %70 : vector<4x16xf32>
    %72 = vector.extract_strided_slice %5 {offsets = [4, 0], sizes = [4, 48], strides = [1, 1]} : vector<16x96xf32> to vector<4x48xf32>
    %73 = vector.extract_strided_slice %5 {offsets = [8, 48], sizes = [4, 48], strides = [1, 1]} : vector<16x96xf32> to vector<4x48xf32>
    %cst_23 = arith.constant dense<0.000000e+00> : vector<4x48xf32>
    %74 = tpu.matmul %42, %6, %cst_23 {dimension_numbers = #tpu.dot_dimension_numbers<[1], [0], [0], [1], [0, 0, 1, 1], [], []>} : vector<4x16xf32>, vector<16x48xf32>, vector<4x48xf32> -> vector<4x48xf32>
    %75 = vector.broadcast %7 : vector<1x48xf32> to vector<4x48xf32>
    %76 = arith.addf %74, %75 : vector<4x48xf32>
    %77 = vector.extract_strided_slice %72 {offsets = [0, 0], sizes = [4, 16], strides = [1, 1]} : vector<4x48xf32> to vector<4x16xf32>
    %78 = vector.extract_strided_slice %76 {offsets = [0, 0], sizes = [4, 16], strides = [1, 1]} : vector<4x48xf32> to vector<4x16xf32>
    %79 = arith.addf %77, %78 : vector<4x16xf32>
    %80 = arith.negf %79 : vector<4x16xf32>
    %81 = math.exp %80 : vector<4x16xf32>
    %cst_24 = arith.constant 1.000000e+00 : f32
    %82 = vector.broadcast %cst_24 : f32 to vector<4x16xf32>
    %83 = arith.addf %82, %81 : vector<4x16xf32>
    %84 = arith.divf %82, %83 : vector<4x16xf32>
    %85 = vector.extract_strided_slice %72 {offsets = [0, 16], sizes = [4, 16], strides = [1, 1]} : vector<4x48xf32> to vector<4x16xf32>
    %86 = vector.extract_strided_slice %76 {offsets = [0, 16], sizes = [4, 16], strides = [1, 1]} : vector<4x48xf32> to vector<4x16xf32>
    %87 = arith.addf %85, %86 : vector<4x16xf32>
    %88 = arith.negf %87 : vector<4x16xf32>
    %89 = math.exp %88 : vector<4x16xf32>
    %cst_25 = arith.constant 1.000000e+00 : f32
    %90 = vector.broadcast %cst_25 : f32 to vector<4x16xf32>
    %91 = arith.addf %90, %89 : vector<4x16xf32>
    %92 = arith.divf %90, %91 : vector<4x16xf32>
    %93 = vector.extract_strided_slice %72 {offsets = [0, 32], sizes = [4, 16], strides = [1, 1]} : vector<4x48xf32> to vector<4x16xf32>
    %94 = vector.extract_strided_slice %76 {offsets = [0, 32], sizes = [4, 16], strides = [1, 1]} : vector<4x48xf32> to vector<4x16xf32>
    %95 = arith.mulf %84, %94 : vector<4x16xf32>
    %96 = arith.addf %93, %95 : vector<4x16xf32>
    %97 = math.tanh %96 : vector<4x16xf32>
    %cst_26 = arith.constant 1.000000e+00 : f32
    %98 = vector.broadcast %cst_26 : f32 to vector<4x16xf32>
    %99 = arith.subf %98, %92 : vector<4x16xf32>
    %100 = arith.mulf %99, %97 : vector<4x16xf32>
    %101 = arith.mulf %92, %42 : vector<4x16xf32>
    %102 = arith.addf %100, %101 : vector<4x16xf32>
    %cst_27 = arith.constant dense<0.000000e+00> : vector<4x48xf32>
    %103 = tpu.matmul %71, %8, %cst_27 {dimension_numbers = #tpu.dot_dimension_numbers<[1], [0], [0], [1], [0, 0, 1, 1], [], []>} : vector<4x16xf32>, vector<16x48xf32>, vector<4x48xf32> -> vector<4x48xf32>
    %104 = vector.broadcast %9 : vector<1x48xf32> to vector<4x48xf32>
    %105 = arith.addf %103, %104 : vector<4x48xf32>
    %106 = vector.extract_strided_slice %73 {offsets = [0, 0], sizes = [4, 16], strides = [1, 1]} : vector<4x48xf32> to vector<4x16xf32>
    %107 = vector.extract_strided_slice %105 {offsets = [0, 0], sizes = [4, 16], strides = [1, 1]} : vector<4x48xf32> to vector<4x16xf32>
    %108 = arith.addf %106, %107 : vector<4x16xf32>
    %109 = arith.negf %108 : vector<4x16xf32>
    %110 = math.exp %109 : vector<4x16xf32>
    %cst_28 = arith.constant 1.000000e+00 : f32
    %111 = vector.broadcast %cst_28 : f32 to vector<4x16xf32>
    %112 = arith.addf %111, %110 : vector<4x16xf32>
    %113 = arith.divf %111, %112 : vector<4x16xf32>
    %114 = vector.extract_strided_slice %73 {offsets = [0, 16], sizes = [4, 16], strides = [1, 1]} : vector<4x48xf32> to vector<4x16xf32>
    %115 = vector.extract_strided_slice %105 {offsets = [0, 16], sizes = [4, 16], strides = [1, 1]} : vector<4x48xf32> to vector<4x16xf32>
    %116 = arith.addf %114, %115 : vector<4x16xf32>
    %117 = arith.negf %116 : vector<4x16xf32>
    %118 = math.exp %117 : vector<4x16xf32>
    %cst_29 = arith.constant 1.000000e+00 : f32
    %119 = vector.broadcast %cst_29 : f32 to vector<4x16xf32>
    %120 = arith.addf %119, %118 : vector<4x16xf32>
    %121 = arith.divf %119, %120 : vector<4x16xf32>
    %122 = vector.extract_strided_slice %73 {offsets = [0, 32], sizes = [4, 16], strides = [1, 1]} : vector<4x48xf32> to vector<4x16xf32>
    %123 = vector.extract_strided_slice %105 {offsets = [0, 32], sizes = [4, 16], strides = [1, 1]} : vector<4x48xf32> to vector<4x16xf32>
    %124 = arith.mulf %113, %123 : vector<4x16xf32>
    %125 = arith.addf %122, %124 : vector<4x16xf32>
    %126 = math.tanh %125 : vector<4x16xf32>
    %cst_30 = arith.constant 1.000000e+00 : f32
    %127 = vector.broadcast %cst_30 : f32 to vector<4x16xf32>
    %128 = arith.subf %127, %121 : vector<4x16xf32>
    %129 = arith.mulf %128, %126 : vector<4x16xf32>
    %130 = arith.mulf %121, %71 : vector<4x16xf32>
    %131 = arith.addf %129, %130 : vector<4x16xf32>
    %132 = vector.extract_strided_slice %5 {offsets = [8, 0], sizes = [4, 48], strides = [1, 1]} : vector<16x96xf32> to vector<4x48xf32>
    %133 = vector.extract_strided_slice %5 {offsets = [4, 48], sizes = [4, 48], strides = [1, 1]} : vector<16x96xf32> to vector<4x48xf32>
    %cst_31 = arith.constant dense<0.000000e+00> : vector<4x48xf32>
    %134 = tpu.matmul %102, %6, %cst_31 {dimension_numbers = #tpu.dot_dimension_numbers<[1], [0], [0], [1], [0, 0, 1, 1], [], []>} : vector<4x16xf32>, vector<16x48xf32>, vector<4x48xf32> -> vector<4x48xf32>
    %135 = vector.broadcast %7 : vector<1x48xf32> to vector<4x48xf32>
    %136 = arith.addf %134, %135 : vector<4x48xf32>
    %137 = vector.extract_strided_slice %132 {offsets = [0, 0], sizes = [4, 16], strides = [1, 1]} : vector<4x48xf32> to vector<4x16xf32>
    %138 = vector.extract_strided_slice %136 {offsets = [0, 0], sizes = [4, 16], strides = [1, 1]} : vector<4x48xf32> to vector<4x16xf32>
    %139 = arith.addf %137, %138 : vector<4x16xf32>
    %140 = arith.negf %139 : vector<4x16xf32>
    %141 = math.exp %140 : vector<4x16xf32>
    %cst_32 = arith.constant 1.000000e+00 : f32
    %142 = vector.broadcast %cst_32 : f32 to vector<4x16xf32>
    %143 = arith.addf %142, %141 : vector<4x16xf32>
    %144 = arith.divf %142, %143 : vector<4x16xf32>
    %145 = vector.extract_strided_slice %132 {offsets = [0, 16], sizes = [4, 16], strides = [1, 1]} : vector<4x48xf32> to vector<4x16xf32>
    %146 = vector.extract_strided_slice %136 {offsets = [0, 16], sizes = [4, 16], strides = [1, 1]} : vector<4x48xf32> to vector<4x16xf32>
    %147 = arith.addf %145, %146 : vector<4x16xf32>
    %148 = arith.negf %147 : vector<4x16xf32>
    %149 = math.exp %148 : vector<4x16xf32>
    %cst_33 = arith.constant 1.000000e+00 : f32
    %150 = vector.broadcast %cst_33 : f32 to vector<4x16xf32>
    %151 = arith.addf %150, %149 : vector<4x16xf32>
    %152 = arith.divf %150, %151 : vector<4x16xf32>
    %153 = vector.extract_strided_slice %132 {offsets = [0, 32], sizes = [4, 16], strides = [1, 1]} : vector<4x48xf32> to vector<4x16xf32>
    %154 = vector.extract_strided_slice %136 {offsets = [0, 32], sizes = [4, 16], strides = [1, 1]} : vector<4x48xf32> to vector<4x16xf32>
    %155 = arith.mulf %144, %154 : vector<4x16xf32>
    %156 = arith.addf %153, %155 : vector<4x16xf32>
    %157 = math.tanh %156 : vector<4x16xf32>
    %cst_34 = arith.constant 1.000000e+00 : f32
    %158 = vector.broadcast %cst_34 : f32 to vector<4x16xf32>
    %159 = arith.subf %158, %152 : vector<4x16xf32>
    %160 = arith.mulf %159, %157 : vector<4x16xf32>
    %161 = arith.mulf %152, %102 : vector<4x16xf32>
    %162 = arith.addf %160, %161 : vector<4x16xf32>
    %cst_35 = arith.constant dense<0.000000e+00> : vector<4x48xf32>
    %163 = tpu.matmul %131, %8, %cst_35 {dimension_numbers = #tpu.dot_dimension_numbers<[1], [0], [0], [1], [0, 0, 1, 1], [], []>} : vector<4x16xf32>, vector<16x48xf32>, vector<4x48xf32> -> vector<4x48xf32>
    %164 = vector.broadcast %9 : vector<1x48xf32> to vector<4x48xf32>
    %165 = arith.addf %163, %164 : vector<4x48xf32>
    %166 = vector.extract_strided_slice %133 {offsets = [0, 0], sizes = [4, 16], strides = [1, 1]} : vector<4x48xf32> to vector<4x16xf32>
    %167 = vector.extract_strided_slice %165 {offsets = [0, 0], sizes = [4, 16], strides = [1, 1]} : vector<4x48xf32> to vector<4x16xf32>
    %168 = arith.addf %166, %167 : vector<4x16xf32>
    %169 = arith.negf %168 : vector<4x16xf32>
    %170 = math.exp %169 : vector<4x16xf32>
    %cst_36 = arith.constant 1.000000e+00 : f32
    %171 = vector.broadcast %cst_36 : f32 to vector<4x16xf32>
    %172 = arith.addf %171, %170 : vector<4x16xf32>
    %173 = arith.divf %171, %172 : vector<4x16xf32>
    %174 = vector.extract_strided_slice %133 {offsets = [0, 16], sizes = [4, 16], strides = [1, 1]} : vector<4x48xf32> to vector<4x16xf32>
    %175 = vector.extract_strided_slice %165 {offsets = [0, 16], sizes = [4, 16], strides = [1, 1]} : vector<4x48xf32> to vector<4x16xf32>
    %176 = arith.addf %174, %175 : vector<4x16xf32>
    %177 = arith.negf %176 : vector<4x16xf32>
    %178 = math.exp %177 : vector<4x16xf32>
    %cst_37 = arith.constant 1.000000e+00 : f32
    %179 = vector.broadcast %cst_37 : f32 to vector<4x16xf32>
    %180 = arith.addf %179, %178 : vector<4x16xf32>
    %181 = arith.divf %179, %180 : vector<4x16xf32>
    %182 = vector.extract_strided_slice %133 {offsets = [0, 32], sizes = [4, 16], strides = [1, 1]} : vector<4x48xf32> to vector<4x16xf32>
    %183 = vector.extract_strided_slice %165 {offsets = [0, 32], sizes = [4, 16], strides = [1, 1]} : vector<4x48xf32> to vector<4x16xf32>
    %184 = arith.mulf %173, %183 : vector<4x16xf32>
    %185 = arith.addf %182, %184 : vector<4x16xf32>
    %186 = math.tanh %185 : vector<4x16xf32>
    %cst_38 = arith.constant 1.000000e+00 : f32
    %187 = vector.broadcast %cst_38 : f32 to vector<4x16xf32>
    %188 = arith.subf %187, %181 : vector<4x16xf32>
    %189 = arith.mulf %188, %186 : vector<4x16xf32>
    %190 = arith.mulf %181, %131 : vector<4x16xf32>
    %191 = arith.addf %189, %190 : vector<4x16xf32>
    %192 = vector.extract_strided_slice %5 {offsets = [12, 0], sizes = [4, 48], strides = [1, 1]} : vector<16x96xf32> to vector<4x48xf32>
    %193 = vector.extract_strided_slice %5 {offsets = [0, 48], sizes = [4, 48], strides = [1, 1]} : vector<16x96xf32> to vector<4x48xf32>
    %cst_39 = arith.constant dense<0.000000e+00> : vector<4x48xf32>
    %194 = tpu.matmul %162, %6, %cst_39 {dimension_numbers = #tpu.dot_dimension_numbers<[1], [0], [0], [1], [0, 0, 1, 1], [], []>} : vector<4x16xf32>, vector<16x48xf32>, vector<4x48xf32> -> vector<4x48xf32>
    %195 = vector.broadcast %7 : vector<1x48xf32> to vector<4x48xf32>
    %196 = arith.addf %194, %195 : vector<4x48xf32>
    %197 = vector.extract_strided_slice %192 {offsets = [0, 0], sizes = [4, 16], strides = [1, 1]} : vector<4x48xf32> to vector<4x16xf32>
    %198 = vector.extract_strided_slice %196 {offsets = [0, 0], sizes = [4, 16], strides = [1, 1]} : vector<4x48xf32> to vector<4x16xf32>
    %199 = arith.addf %197, %198 : vector<4x16xf32>
    %200 = arith.negf %199 : vector<4x16xf32>
    %201 = math.exp %200 : vector<4x16xf32>
    %cst_40 = arith.constant 1.000000e+00 : f32
    %202 = vector.broadcast %cst_40 : f32 to vector<4x16xf32>
    %203 = arith.addf %202, %201 : vector<4x16xf32>
    %204 = arith.divf %202, %203 : vector<4x16xf32>
    %205 = vector.extract_strided_slice %192 {offsets = [0, 16], sizes = [4, 16], strides = [1, 1]} : vector<4x48xf32> to vector<4x16xf32>
    %206 = vector.extract_strided_slice %196 {offsets = [0, 16], sizes = [4, 16], strides = [1, 1]} : vector<4x48xf32> to vector<4x16xf32>
    %207 = arith.addf %205, %206 : vector<4x16xf32>
    %208 = arith.negf %207 : vector<4x16xf32>
    %209 = math.exp %208 : vector<4x16xf32>
    %cst_41 = arith.constant 1.000000e+00 : f32
    %210 = vector.broadcast %cst_41 : f32 to vector<4x16xf32>
    %211 = arith.addf %210, %209 : vector<4x16xf32>
    %212 = arith.divf %210, %211 : vector<4x16xf32>
    %213 = vector.extract_strided_slice %192 {offsets = [0, 32], sizes = [4, 16], strides = [1, 1]} : vector<4x48xf32> to vector<4x16xf32>
    %214 = vector.extract_strided_slice %196 {offsets = [0, 32], sizes = [4, 16], strides = [1, 1]} : vector<4x48xf32> to vector<4x16xf32>
    %215 = arith.mulf %204, %214 : vector<4x16xf32>
    %216 = arith.addf %213, %215 : vector<4x16xf32>
    %217 = math.tanh %216 : vector<4x16xf32>
    %cst_42 = arith.constant 1.000000e+00 : f32
    %218 = vector.broadcast %cst_42 : f32 to vector<4x16xf32>
    %219 = arith.subf %218, %212 : vector<4x16xf32>
    %220 = arith.mulf %219, %217 : vector<4x16xf32>
    %221 = arith.mulf %212, %162 : vector<4x16xf32>
    %222 = arith.addf %220, %221 : vector<4x16xf32>
    %cst_43 = arith.constant dense<0.000000e+00> : vector<4x48xf32>
    %223 = tpu.matmul %191, %8, %cst_43 {dimension_numbers = #tpu.dot_dimension_numbers<[1], [0], [0], [1], [0, 0, 1, 1], [], []>} : vector<4x16xf32>, vector<16x48xf32>, vector<4x48xf32> -> vector<4x48xf32>
    %224 = vector.broadcast %9 : vector<1x48xf32> to vector<4x48xf32>
    %225 = arith.addf %223, %224 : vector<4x48xf32>
    %226 = vector.extract_strided_slice %193 {offsets = [0, 0], sizes = [4, 16], strides = [1, 1]} : vector<4x48xf32> to vector<4x16xf32>
    %227 = vector.extract_strided_slice %225 {offsets = [0, 0], sizes = [4, 16], strides = [1, 1]} : vector<4x48xf32> to vector<4x16xf32>
    %228 = arith.addf %226, %227 : vector<4x16xf32>
    %229 = arith.negf %228 : vector<4x16xf32>
    %230 = math.exp %229 : vector<4x16xf32>
    %cst_44 = arith.constant 1.000000e+00 : f32
    %231 = vector.broadcast %cst_44 : f32 to vector<4x16xf32>
    %232 = arith.addf %231, %230 : vector<4x16xf32>
    %233 = arith.divf %231, %232 : vector<4x16xf32>
    %234 = vector.extract_strided_slice %193 {offsets = [0, 16], sizes = [4, 16], strides = [1, 1]} : vector<4x48xf32> to vector<4x16xf32>
    %235 = vector.extract_strided_slice %225 {offsets = [0, 16], sizes = [4, 16], strides = [1, 1]} : vector<4x48xf32> to vector<4x16xf32>
    %236 = arith.addf %234, %235 : vector<4x16xf32>
    %237 = arith.negf %236 : vector<4x16xf32>
    %238 = math.exp %237 : vector<4x16xf32>
    %cst_45 = arith.constant 1.000000e+00 : f32
    %239 = vector.broadcast %cst_45 : f32 to vector<4x16xf32>
    %240 = arith.addf %239, %238 : vector<4x16xf32>
    %241 = arith.divf %239, %240 : vector<4x16xf32>
    %242 = vector.extract_strided_slice %193 {offsets = [0, 32], sizes = [4, 16], strides = [1, 1]} : vector<4x48xf32> to vector<4x16xf32>
    %243 = vector.extract_strided_slice %225 {offsets = [0, 32], sizes = [4, 16], strides = [1, 1]} : vector<4x48xf32> to vector<4x16xf32>
    %244 = arith.mulf %233, %243 : vector<4x16xf32>
    %245 = arith.addf %242, %244 : vector<4x16xf32>
    %246 = math.tanh %245 : vector<4x16xf32>
    %cst_46 = arith.constant 1.000000e+00 : f32
    %247 = vector.broadcast %cst_46 : f32 to vector<4x16xf32>
    %248 = arith.subf %247, %241 : vector<4x16xf32>
    %249 = arith.mulf %248, %246 : vector<4x16xf32>
    %250 = arith.mulf %241, %191 : vector<4x16xf32>
    %251 = arith.addf %249, %250 : vector<4x16xf32>
    %252 = tpu.concatenate %42, %251 in 1 : vector<4x16xf32>, vector<4x16xf32> -> vector<4x32xf32>
    %253 = tpu.concatenate %102, %191 in 1 : vector<4x16xf32>, vector<4x16xf32> -> vector<4x32xf32>
    %254 = tpu.concatenate %162, %131 in 1 : vector<4x16xf32>, vector<4x16xf32> -> vector<4x32xf32>
    %255 = tpu.concatenate %222, %71 in 1 : vector<4x16xf32>, vector<4x16xf32> -> vector<4x32xf32>
    %256 = tpu.concatenate %252, %253, %254, %255 in 0 : vector<4x32xf32>, vector<4x32xf32>, vector<4x32xf32>, vector<4x32xf32> -> vector<16x32xf32>
    %c0_47 = arith.constant 0 : index
    %c0_48 = arith.constant 0 : index
    %257 = vector.load %arg7[%c0_47, %c0_48] : memref<32x32xf32, #tpu.memory_space<vmem>>, vector<32x32xf32>
    %cst_49 = arith.constant dense<0.000000e+00> : vector<16x32xf32>
    %258 = tpu.matmul %256, %257, %cst_49 {dimension_numbers = #tpu.dot_dimension_numbers<[1], [0], [0], [1], [0, 0, 1, 1], [], []>} : vector<16x32xf32>, vector<32x32xf32>, vector<16x32xf32> -> vector<16x32xf32>
    %c0_50 = arith.constant 0 : index
    %c0_51 = arith.constant 0 : index
    %259 = vector.load %arg8[%c0_50, %c0_51] : memref<1x32xf32, #tpu.memory_space<vmem>>, vector<1x32xf32>
    %260 = vector.broadcast %259 : vector<1x32xf32> to vector<16x32xf32>
    %261 = arith.addf %258, %260 : vector<16x32xf32>
    %c0_52 = arith.constant 0 : index
    %c0_53 = arith.constant 0 : index
    %262 = vector.load %arg9[%c0_52, %c0_53] : memref<1x32xf32, #tpu.memory_space<vmem>>, vector<1x32xf32>
    %263 = math.tanh %261 : vector<16x32xf32>
    %264 = vector.broadcast %262 : vector<1x32xf32> to vector<16x32xf32>
    %265 = arith.mulf %264, %263 : vector<16x32xf32>
    %266 = vector.shape_cast %265 : vector<16x32xf32> to vector<1x16x32xf32>
    %cst_54 = arith.constant dense<0xFF800000> : vector<1xf32>
    %267 = vector.multi_reduction <maximumf>, %266, %cst_54 [1, 2] : vector<1x16x32xf32> to vector<1xf32>
    %268 = vector.shape_cast %267 : vector<1xf32> to vector<1x1x1xf32>
    %269 = vector.extract %268[0, 0, 0] : f32 from vector<1x1x1xf32>
    %270 = vector.broadcast %269 : f32 to vector<1x1xf32>
    %271 = vector.broadcast %270 : vector<1x1xf32> to vector<16x32xf32>
    %272 = arith.subf %265, %271 : vector<16x32xf32>
    %273 = math.exp %272 : vector<16x32xf32>
    %274 = vector.extract_strided_slice %273 {offsets = [0, 0], sizes = [4, 32], strides = [1, 1]} : vector<16x32xf32> to vector<4x32xf32>
    %275 = vector.extract_strided_slice %273 {offsets = [4, 0], sizes = [4, 32], strides = [1, 1]} : vector<16x32xf32> to vector<4x32xf32>
    %276 = vector.extract_strided_slice %273 {offsets = [8, 0], sizes = [4, 32], strides = [1, 1]} : vector<16x32xf32> to vector<4x32xf32>
    %277 = vector.extract_strided_slice %273 {offsets = [12, 0], sizes = [4, 32], strides = [1, 1]} : vector<16x32xf32> to vector<4x32xf32>
    %278 = arith.addf %274, %275 : vector<4x32xf32>
    %279 = arith.addf %278, %276 : vector<4x32xf32>
    %280 = arith.addf %279, %277 : vector<4x32xf32>
    %281 = tpu.reciprocal %280 {approx = true} : vector<4x32xf32> -> vector<4x32xf32>
    %282 = arith.mulf %274, %281 : vector<4x32xf32>
    %283 = arith.mulf %275, %281 : vector<4x32xf32>
    %284 = arith.mulf %276, %281 : vector<4x32xf32>
    %285 = arith.mulf %277, %281 : vector<4x32xf32>
    %286 = tpu.concatenate %282, %283, %284, %285 in 1 : vector<4x32xf32>, vector<4x32xf32>, vector<4x32xf32>, vector<4x32xf32> -> vector<4x128xf32>
    %c0_55 = arith.constant 0 : index
    %c0_56 = arith.constant 0 : index
    %287 = vector.load %arg11[%c0_55, %c0_56] : memref<4x128xf32, #tpu.memory_space<vmem>>, vector<4x128xf32>
    tpu.vector_store %arg11[%c0_55, %c0_56], %286 {strides = array<i32>} : memref<4x128xf32, #tpu.memory_space<vmem>>, vector<4x128xf32>,
    %288 = vector.extract_strided_slice %252 {offsets = [0, 0], sizes = [1, 32], strides = [1, 1]} : vector<4x32xf32> to vector<1x32xf32>
    %289 = vector.broadcast %288 : vector<1x32xf32> to vector<4x32xf32>
    %290 = arith.mulf %282, %289 : vector<4x32xf32>
    %291 = vector.extract_strided_slice %252 {offsets = [1, 0], sizes = [1, 32], strides = [1, 1]} : vector<4x32xf32> to vector<1x32xf32>
    %292 = vector.broadcast %291 : vector<1x32xf32> to vector<4x32xf32>
    %293 = arith.mulf %283, %292 : vector<4x32xf32>
    %294 = arith.addf %290, %293 : vector<4x32xf32>
    %295 = vector.extract_strided_slice %252 {offsets = [2, 0], sizes = [1, 32], strides = [1, 1]} : vector<4x32xf32> to vector<1x32xf32>
    %296 = vector.broadcast %295 : vector<1x32xf32> to vector<4x32xf32>
    %297 = arith.mulf %284, %296 : vector<4x32xf32>
    %298 = arith.addf %294, %297 : vector<4x32xf32>
    %299 = vector.extract_strided_slice %252 {offsets = [3, 0], sizes = [1, 32], strides = [1, 1]} : vector<4x32xf32> to vector<1x32xf32>
    %300 = vector.broadcast %299 : vector<1x32xf32> to vector<4x32xf32>
    %301 = arith.mulf %285, %300 : vector<4x32xf32>
    %302 = arith.addf %298, %301 : vector<4x32xf32>
    %303 = vector.extract_strided_slice %253 {offsets = [0, 0], sizes = [1, 32], strides = [1, 1]} : vector<4x32xf32> to vector<1x32xf32>
    %304 = vector.broadcast %303 : vector<1x32xf32> to vector<4x32xf32>
    %305 = arith.mulf %282, %304 : vector<4x32xf32>
    %306 = vector.extract_strided_slice %253 {offsets = [1, 0], sizes = [1, 32], strides = [1, 1]} : vector<4x32xf32> to vector<1x32xf32>
    %307 = vector.broadcast %306 : vector<1x32xf32> to vector<4x32xf32>
    %308 = arith.mulf %283, %307 : vector<4x32xf32>
    %309 = arith.addf %305, %308 : vector<4x32xf32>
    %310 = vector.extract_strided_slice %253 {offsets = [2, 0], sizes = [1, 32], strides = [1, 1]} : vector<4x32xf32> to vector<1x32xf32>
    %311 = vector.broadcast %310 : vector<1x32xf32> to vector<4x32xf32>
    %312 = arith.mulf %284, %311 : vector<4x32xf32>
    %313 = arith.addf %309, %312 : vector<4x32xf32>
    %314 = vector.extract_strided_slice %253 {offsets = [3, 0], sizes = [1, 32], strides = [1, 1]} : vector<4x32xf32> to vector<1x32xf32>
    %315 = vector.broadcast %314 : vector<1x32xf32> to vector<4x32xf32>
    %316 = arith.mulf %285, %315 : vector<4x32xf32>
    %317 = arith.addf %313, %316 : vector<4x32xf32>
    %318 = vector.extract_strided_slice %254 {offsets = [0, 0], sizes = [1, 32], strides = [1, 1]} : vector<4x32xf32> to vector<1x32xf32>
    %319 = vector.broadcast %318 : vector<1x32xf32> to vector<4x32xf32>
    %320 = arith.mulf %282, %319 : vector<4x32xf32>
    %321 = vector.extract_strided_slice %254 {offsets = [1, 0], sizes = [1, 32], strides = [1, 1]} : vector<4x32xf32> to vector<1x32xf32>
    %322 = vector.broadcast %321 : vector<1x32xf32> to vector<4x32xf32>
    %323 = arith.mulf %283, %322 : vector<4x32xf32>
    %324 = arith.addf %320, %323 : vector<4x32xf32>
    %325 = vector.extract_strided_slice %254 {offsets = [2, 0], sizes = [1, 32], strides = [1, 1]} : vector<4x32xf32> to vector<1x32xf32>
    %326 = vector.broadcast %325 : vector<1x32xf32> to vector<4x32xf32>
    %327 = arith.mulf %284, %326 : vector<4x32xf32>
    %328 = arith.addf %324, %327 : vector<4x32xf32>
    %329 = vector.extract_strided_slice %254 {offsets = [3, 0], sizes = [1, 32], strides = [1, 1]} : vector<4x32xf32> to vector<1x32xf32>
    %330 = vector.broadcast %329 : vector<1x32xf32> to vector<4x32xf32>
    %331 = arith.mulf %285, %330 : vector<4x32xf32>
    %332 = arith.addf %328, %331 : vector<4x32xf32>
    %333 = vector.extract_strided_slice %255 {offsets = [0, 0], sizes = [1, 32], strides = [1, 1]} : vector<4x32xf32> to vector<1x32xf32>
    %334 = vector.broadcast %333 : vector<1x32xf32> to vector<4x32xf32>
    %335 = arith.mulf %282, %334 : vector<4x32xf32>
    %336 = vector.extract_strided_slice %255 {offsets = [1, 0], sizes = [1, 32], strides = [1, 1]} : vector<4x32xf32> to vector<1x32xf32>
    %337 = vector.broadcast %336 : vector<1x32xf32> to vector<4x32xf32>
    %338 = arith.mulf %283, %337 : vector<4x32xf32>
    %339 = arith.addf %335, %338 : vector<4x32xf32>
    %340 = vector.extract_strided_slice %255 {offsets = [2, 0], sizes = [1, 32], strides = [1, 1]} : vector<4x32xf32> to vector<1x32xf32>
    %341 = vector.broadcast %340 : vector<1x32xf32> to vector<4x32xf32>
    %342 = arith.mulf %284, %341 : vector<4x32xf32>
    %343 = arith.addf %339, %342 : vector<4x32xf32>
    %344 = vector.extract_strided_slice %255 {offsets = [3, 0], sizes = [1, 32], strides = [1, 1]} : vector<4x32xf32> to vector<1x32xf32>
    %345 = vector.broadcast %344 : vector<1x32xf32> to vector<4x32xf32>
    %346 = arith.mulf %285, %345 : vector<4x32xf32>
    %347 = arith.addf %343, %346 : vector<4x32xf32>
    %348 = tpu.concatenate %302, %317, %332, %347 in 1 : vector<4x32xf32>, vector<4x32xf32>, vector<4x32xf32>, vector<4x32xf32> -> vector<4x128xf32>
    %c0_57 = arith.constant 0 : index
    %c0_58 = arith.constant 0 : index
    %349 = vector.load %arg10[%c0_57, %c0_58] : memref<4x128xf32, #tpu.memory_space<vmem>>, vector<4x128xf32>
    tpu.vector_store %arg10[%c0_57, %c0_58], %348 {strides = array<i32>} : memref<4x128xf32, #tpu.memory_space<vmem>>, vector<4x128xf32>,
    return
  }
}

</mosaic_0001>

<llo_original>
// kernel: tpu_custom_call.1
$region0: #{tpu_custom_call.1}
  #allocation0 [shape = 'u32[]', space=smem, size = 0x4, offset = 0x4, fixed_abs, tag = 'smem constant byte address 0x4 - core index']
  #allocation1 [shape = 'u32[144,128]{1,0:T(1,128)}', space=vmem, size = 0x12000, scoped, tag = 'internal scratch']
  %s0 = inlined_call_operand.hbm [shape: f32[16,32], index: 0, kind: input, shape index: {}]
  %s1 = inlined_call_operand.hbm [shape: f32[32,96], index: 1, kind: input, shape index: {}]
  %s2 = inlined_call_operand.vmem [shape: f32[1,96], index: 2, kind: input, shape index: {}]
  %s3 = inlined_call_operand.hbm [shape: f32[16,48], index: 3, kind: input, shape index: {}]
  %s4 = inlined_call_operand.vmem [shape: f32[1,48], index: 4, kind: input, shape index: {}]
  %s5 = inlined_call_operand.hbm [shape: f32[16,48], index: 5, kind: input, shape index: {}]
  %s6 = inlined_call_operand.vmem [shape: f32[1,48], index: 6, kind: input, shape index: {}]
  %s7 = inlined_call_operand.hbm [shape: f32[32,32], index: 7, kind: input, shape index: {}]
  %s8 = inlined_call_operand.vmem [shape: f32[1,32], index: 8, kind: input, shape index: {}]
  %s9 = inlined_call_operand.vmem [shape: f32[1,32], index: 9, kind: input, shape index: {}]
  %s10 = inlined_call_operand.hbm [shape: f32[4,128], index: 10, kind: output, shape index: {0}]
  %s11 = inlined_call_operand.hbm [shape: f32[4,128], index: 11, kind: output, shape index: {1}]
  %12 = xla_tuple %s10, %s11
  %s13 = sld [smem:[#allocation0]]
  $region78: #{tpu_custom_call.1} parent=0
    _
  %s15 = ssub.s32 1, %s13
  %s16 = scalar_select 0, %s15, %s13
  $region1: #{tpu_custom_call.1} parent=0
    #allocation2 [shape = 'u8[8192]{0}', space=vmem, size = 0x2000, scoped, tag = 'input window, operand 0, single buffered']
    #allocation3 [shape = 's32[1]{0}', space=sflag, size = 0x4, scoped, tag = 'scoped memory for tpu_custom_call.1']
    #allocation4 [shape = 's32[1]{0}', space=sflag, size = 0x4, scoped, tag = 'scoped memory for tpu_custom_call.1']
    #allocation5 [shape = 'u8[16384]{0}', space=vmem, size = 0x4000, scoped, tag = 'input window, operand 1, single buffered']
    #allocation6 [shape = 's32[1]{0}', space=sflag, size = 0x4, scoped, tag = 'scoped memory for tpu_custom_call.1']
    #allocation7 [shape = 'u8[8192]{0}', space=vmem, size = 0x2000, scoped, tag = 'input window, operand 3, single buffered']
    #allocation8 [shape = 'u8[8192]{0}', space=vmem, size = 0x2000, scoped, tag = 'input window, operand 5, single buffered']
    #allocation9 [shape = 's32[1]{0}', space=sflag, size = 0x4, scoped, tag = 'scoped memory for tpu_custom_call.1']
    #allocation10 [shape = 'u8[16384]{0}', space=vmem, size = 0x4000, scoped, tag = 'input window, operand 7, single buffered']
    #allocation11 [shape = 'u8[2048]{0}', space=vmem, size = 0x800, scoped, tag = 'output window, operand 0, single buffered']
    #allocation12 [shape = 'u8[2048]{0}', space=vmem, size = 0x800, scoped, tag = 'output window, operand 1, single buffered']
    #allocation13 [shape = 's32[1]{0}', space=sflag, size = 0x4, scoped, tag = 'scoped memory for tpu_custom_call.1']
    %17 = vsyncpa [#allocation3], 0
    %18 = vsyncpa [#allocation6], 0
    %19 = vsyncpa [#allocation9], 0
    %20 = vsyncpa [#allocation4], 0
    %21 = vsyncpa [#allocation13], 0
    // Predicated region
    $region2: #{tpu_custom_call.1} parent=1 // pred_check
      _
    $region3: #{tpu_custom_call.1} parent=1 // pred_check_branch
      %23 = sbr.rel (0) target = $region5
    $region4: #{tpu_custom_call.1} parent=1 // pred_region
      %s25 = ssub.s32 256, 256
      %26 = vsyncadd [#allocation3], %s25
      %s27 = sshll.u32 [#allocation2], 4
      %s28 = int_to_ptr.vmem [resolvable:$true] %s27
      %33 = dma.hbm_to_vmem [thread:$0]  %s0, 256, %s28, [#allocation3], 128, 128, 8
    $region5: #{tpu_custom_call.1} parent=1 // pred_fallthru
      _
    // Predicated region
    $region6: #{tpu_custom_call.1} parent=1 // pred_check
      _
    $region7: #{tpu_custom_call.1} parent=1 // pred_check_branch
      %35 = sbr.rel (0) target = $region9
    $region8: #{tpu_custom_call.1} parent=1 // pred_region
      %s37 = ssub.s32 512, 512
      %38 = vsyncadd [#allocation6], %s37
      %s39 = sshll.u32 [#allocation5], 4
      %s40 = int_to_ptr.vmem [resolvable:$true] %s39
      %45 = dma.hbm_to_vmem [thread:$0]  %s1, 512, %s40, [#allocation6], 128, 128, 8
    $region9: #{tpu_custom_call.1} parent=1 // pred_fallthru
      _
    // Predicated region
    $region10: #{tpu_custom_call.1} parent=1 // pred_check
      _
    $region11: #{tpu_custom_call.1} parent=1 // pred_check_branch
      %47 = sbr.rel (0) target = $region13
    $region12: #{tpu_custom_call.1} parent=1 // pred_region
      _
    $region13: #{tpu_custom_call.1} parent=1 // pred_fallthru
      _
    // Predicated region
    $region14: #{tpu_custom_call.1} parent=1 // pred_check
      _
    $region15: #{tpu_custom_call.1} parent=1 // pred_check_branch
      %49 = sbr.rel (0) target = $region17
    $region16: #{tpu_custom_call.1} parent=1 // pred_region
      %s51 = ssub.s32 256, 256
      %52 = vsyncadd [#allocation6], %s51
      %s53 = sshll.u32 [#allocation7], 4
      %s54 = int_to_ptr.vmem [resolvable:$true] %s53
      %59 = dma.hbm_to_vmem [thread:$0]  %s3, 256, %s54, [#allocation6], 128, 128, 8
    $region17: #{tpu_custom_call.1} parent=1 // pred_fallthru
      _
    // Predicated region
    $region18: #{tpu_custom_call.1} parent=1 // pred_check
      _
    $region19: #{tpu_custom_call.1} parent=1 // pred_check_branch
      %61 = sbr.rel (0) target = $region21
    $region20: #{tpu_custom_call.1} parent=1 // pred_region
      _
    $region21: #{tpu_custom_call.1} parent=1 // pred_fallthru
      _
    // Predicated region
    $region22: #{tpu_custom_call.1} parent=1 // pred_check
      _
    $region23: #{tpu_custom_call.1} parent=1 // pred_check_branch
      %63 = sbr.rel (0) target = $region25
    $region24: #{tpu_custom_call.1} parent=1 // pred_region
      %s65 = ssub.s32 256, 256
      %66 = vsyncadd [#allocation9], %s65
      %s67 = sshll.u32 [#allocation8], 4
      %s68 = int_to_ptr.vmem [resolvable:$true] %s67
      %73 = dma.hbm_to_vmem [thread:$0]  %s5, 256, %s68, [#allocation9], 128, 128, 8
    $region25: #{tpu_custom_call.1} parent=1 // pred_fallthru
      _
    // Predicated region
    $region26: #{tpu_custom_call.1} parent=1 // pred_check
      _
    $region27: #{tpu_custom_call.1} parent=1 // pred_check_branch
      %75 = sbr.rel (0) target = $region29
    $region28: #{tpu_custom_call.1} parent=1 // pred_region
      _
    $region29: #{tpu_custom_call.1} parent=1 // pred_fallthru
      _
    // Predicated region
    $region30: #{tpu_custom_call.1} parent=1 // pred_check
      _
    $region31: #{tpu_custom_call.1} parent=1 // pred_check_branch
      %77 = sbr.rel (0) target = $region33
    $region32: #{tpu_custom_call.1} parent=1 // pred_region
      %s79 = ssub.s32 512, 512
      %80 = vsyncadd [#allocation9], %s79
      %s81 = sshll.u32 [#allocation10], 4
      %s82 = int_to_ptr.vmem [resolvable:$true] %s81
      %87 = dma.hbm_to_vmem [thread:$0]  %s7, 512, %s82, [#allocation9], 128, 128, 8
    $region33: #{tpu_custom_call.1} parent=1 // pred_fallthru
      _
    // Predicated region
    $region34: #{tpu_custom_call.1} parent=1 // pred_check
      _
    $region35: #{tpu_custom_call.1} parent=1 // pred_check_branch
      %89 = sbr.rel (0) target = $region37
    $region36: #{tpu_custom_call.1} parent=1 // pred_region
      _
    $region37: #{tpu_custom_call.1} parent=1 // pred_fallthru
      _
    // Predicated region
    $region38: #{tpu_custom_call.1} parent=1 // pred_check
      _
    $region39: #{tpu_custom_call.1} parent=1 // pred_check_branch
      %91 = sbr.rel (0) target = $region41
    $region40: #{tpu_custom_call.1} parent=1 // pred_region
      _
    $region41: #{tpu_custom_call.1} parent=1 // pred_fallthru
      _
    // Predicated region
    $region42: #{tpu_custom_call.1} parent=1 // pred_check
      _
    $region43: #{tpu_custom_call.1} parent=1 // pred_check_branch
      %93 = sbr.rel (0) target = $region45
    $region44: #{tpu_custom_call.1} parent=1 // pred_region
      %94 = dma.done [#allocation3], 256
    $region45: #{tpu_custom_call.1} parent=1 // pred_fallthru
      _
    // Predicated region
    $region46: #{tpu_custom_call.1} parent=1 // pred_check
      _
    $region47: #{tpu_custom_call.1} parent=1 // pred_check_branch
      %96 = sbr.rel (0) target = $region49
    $region48: #{tpu_custom_call.1} parent=1 // pred_region
      %97 = dma.done [#allocation6], 512
    $region49: #{tpu_custom_call.1} parent=1 // pred_fallthru
      _
    // Predicated region
    $region50: #{tpu_custom_call.1} parent=1 // pred_check
      _
    $region51: #{tpu_custom_call.1} parent=1 // pred_check_branch
      %99 = sbr.rel (0) target = $region53
    $region52: #{tpu_custom_call.1} parent=1 // pred_region
      %100 = dma.done [#allocation6], 256
    $region53: #{tpu_custom_call.1} parent=1 // pred_fallthru
      _
    // Predicated region
    $region54: #{tpu_custom_call.1} parent=1 // pred_check
      _
    $region55: #{tpu_custom_call.1} parent=1 // pred_check_branch
      %102 = sbr.rel (0) target = $region57
    $region56: #{tpu_custom_call.1} parent=1 // pred_region
      %103 = dma.done [#allocation9], 256
    $region57: #{tpu_custom_call.1} parent=1 // pred_fallthru
      _
    // Predicated region
    $region58: #{tpu_custom_call.1} parent=1 // pred_check
      _
    $region59: #{tpu_custom_call.1} parent=1 // pred_check_branch
      %105 = sbr.rel (0) target = $region61
    $region60: #{tpu_custom_call.1} parent=1 // pred_region
      %106 = dma.done [#allocation9], 512
    $region61: #{tpu_custom_call.1} parent=1 // pred_fallthru
      _
    %v107 = vld [vmem:[#allocation2] sm:$0xff]
    %v108 = vld [vmem:[#allocation2 + $0x8] sm:$0xff]
    %v109 = vld [vmem:[#allocation5] sm:$0xff]
    %v110 = vld [vmem:[#allocation5 + $0x8] sm:$0xff]
    %v111 = vld [vmem:[#allocation5 + $0x10] sm:$0xff]
    %v112 = vld [vmem:[#allocation5 + $0x18] sm:$0xff]
    %v113 = vld [vmem:[%s2] sm:$0x1]
    %v115 = vlaneseq
    %v116 = vshrl.u32 %v115, 7
    %v117 = vsub.s32 0, %v116
    %v118 = vrot.slane %v113, %v117
    %vm120 = vcmask 261120
    %v122 = vsel %vm120, %v107, 0
    %v125 = vsel %vm120, %v108, 0
    %127 = vmatprep.subr.mxu0 0.0
    %128 = vmatpush1.msra.mxu0 0.0
    %129 = vmatprep.subr.mxu0 0.0
    %130 = vmatpush1.msra.mxu0 0.0
    %131 = vmatprep.subr.mxu0 0.0
    %132 = vmatpush1.msra.mxu0 0.0
    %133 = vmatprep.subr.mxu0 0.0
    %134 = vmatpush1.msra.mxu0 0.0
    %135 = vmatprep.subr.mxu0 0.0
    %136 = vmatpush1.msra.mxu0 0.0
    %137 = vmatprep.subr.mxu0 0.0
    %138 = vmatpush1.msra.mxu0 0.0
    %139 = vmatprep.subr.mxu0 0.0
    %140 = vmatpush1.msra.mxu0 0.0
    %141 = vmatprep.subr.mxu0 0.0
    %142 = vmatpush1.msra.mxu0 0.0
    %143 = vmatprep.subr.mxu0 0.0
    %144 = vmatpush1.msra.mxu0 0.0
    %145 = vmatprep.subr.mxu0 0.0
    %146 = vmatpush1.msra.mxu0 0.0
    %147 = vmatprep.subr.mxu0 0.0
    %148 = vmatpush1.msra.mxu0 0.0
    %149 = vmatprep.subr.mxu0 0.0
    %150 = vmatpush1.msra.mxu0 0.0
    %151 = vmatprep.subr.mxu0 0.0
    %152 = vmatpush1.msra.mxu0 %v112
    %153 = vmatprep.subr.mxu0 0.0
    %154 = vmatpush1.msra.mxu0 %v111
    %155 = vmatprep.subr.mxu0 0.0
    %156 = vmatpush1.msra.mxu0 %v110
    %157 = vmatprep.subr.mxu0 0.0
    %158 = vmatpush1.msra.mxu0 %v109
    %159 = vmatprep.subr.mxu0 0.0
    %160 = vmatpush2.msra.mxu0 0.0
    %161 = vmatprep.subr.mxu0 0.0
    %162 = vmatpush2.msra.mxu0 0.0
    %163 = vmatprep.subr.mxu0 0.0
    %164 = vmatpush2.msra.mxu0 0.0
    %165 = vmatprep.subr.mxu0 0.0
    %166 = vmatpush2.msra.mxu0 0.0
    %167 = vmatprep.subr.mxu0 0.0
    %168 = vmatpush2.msra.mxu0 0.0
    %169 = vmatprep.subr.mxu0 0.0
    %170 = vmatpush2.msra.mxu0 0.0
    %171 = vmatprep.subr.mxu0 0.0
    %172 = vmatpush2.msra.mxu0 0.0
    %173 = vmatprep.subr.mxu0 0.0
    %174 = vmatpush2.msra.mxu0 0.0
    %175 = vmatprep.subr.mxu0 0.0
    %176 = vmatpush2.msra.mxu0 0.0
    %177 = vmatprep.subr.mxu0 0.0
    %178 = vmatpush2.msra.mxu0 0.0
    %179 = vmatprep.subr.mxu0 0.0
    %180 = vmatpush2.msra.mxu0 0.0
    %181 = vmatprep.subr.mxu0 0.0
    %182 = vmatpush2.msra.mxu0 0.0
    %183 = vmatprep.subr.mxu0 0.0
    %184 = vmatpush2.msra.mxu0 0.0
    %185 = vmatprep.subr.mxu0 0.0
    %186 = vmatpush2.msra.mxu0 0.0
    %187 = vmatprep.subr.mxu0 0.0
    %188 = vmatpush2.msra.mxu0 0.0
    %189 = vmatprep.subr.mxu0 0.0
    %190 = vmatpush2.msra.mxu0 0.0
    %191 = vmatprep.mubr.f32.mxu0 0.0
    %192 = vmatmul.mubr.f32.gmra.mxu0 %v122
    %v193 = vpop.f32.mrf.mxu0
    %v194 = vadd.f32 %v118, %v193
    %v195 = vpop.f32.mrf.mxu0
    %196 = vmatprep.mubr.f32.mxu0 0.0
    %197 = vmatmul.mubr.f32.gmra.mxu0 %v125
    %v198 = vpop.f32.mrf.mxu0
    %v199 = vadd.f32 %v118, %v198
    %v200 = vpop.f32.mrf.mxu0
    %201 = vdwg.mxu0
    %v202 = vld [vmem:[#allocation7] sm:$0xff]
    %v203 = vld [vmem:[#allocation7 + $0x8] sm:$0xff]
    %v204 = vld [vmem:[%s4] sm:$0x1]
    %v205 = vld [vmem:[#allocation8] sm:$0xff]
    %v206 = vld [vmem:[#allocation8 + $0x8] sm:$0xff]
    %v207 = vld [vmem:[%s6] sm:$0x1]
    %v209 = vlaneseq
    %v210 = vshrl.u32 %v209, 7
    %v211 = vsub.s32 0, %v210
    %v212 = vrot.slane %v204, %v211
    %vm214 = vcmask 130048
    %v216 = vsel %vm214, 0.0, 0
    %218 = vmatprep.subr.mxu0 0.0
    %219 = vmatpush1.msra.mxu0 0.0
    %220 = vmatprep.subr.mxu0 0.0
    %221 = vmatpush1.msra.mxu0 0.0
    %222 = vmatprep.subr.mxu0 0.0
    %223 = vmatpush1.msra.mxu0 0.0
    %224 = vmatprep.subr.mxu0 0.0
    %225 = vmatpush1.msra.mxu0 0.0
    %226 = vmatprep.subr.mxu0 0.0
    %227 = vmatpush1.msra.mxu0 0.0
    %228 = vmatprep.subr.mxu0 0.0
    %229 = vmatpush1.msra.mxu0 0.0
    %230 = vmatprep.subr.mxu0 0.0
    %231 = vmatpush1.msra.mxu0 0.0
    %232 = vmatprep.subr.mxu0 0.0
    %233 = vmatpush1.msra.mxu0 0.0
    %234 = vmatprep.subr.mxu0 0.0
    %235 = vmatpush1.msra.mxu0 0.0
    %236 = vmatprep.subr.mxu0 0.0
    %237 = vmatpush1.msra.mxu0 0.0
    %238 = vmatprep.subr.mxu0 0.0
    %239 = vmatpush1.msra.mxu0 0.0
    %240 = vmatprep.subr.mxu0 0.0
    %241 = vmatpush1.msra.mxu0 0.0
    %242 = vmatprep.subr.mxu0 0.0
    %243 = vmatpush1.msra.mxu0 0.0
    %244 = vmatprep.subr.mxu0 0.0
    %245 = vmatpush1.msra.mxu0 0.0
    %246 = vmatprep.subr.mxu0 0.0
    %247 = vmatpush1.msra.mxu0 %v203
    %248 = vmatprep.subr.mxu0 0.0
    %249 = vmatpush1.msra.mxu0 %v202
    %250 = vmatprep.subr.mxu0 0.0
    %251 = vmatpush2.msra.mxu0 0.0
    %252 = vmatprep.subr.mxu0 0.0
    %253 = vmatpush2.msra.mxu0 0.0
    %254 = vmatprep.subr.mxu0 0.0
    %255 = vmatpush2.msra.mxu0 0.0
    %256 = vmatprep.subr.mxu0 0.0
    %257 = vmatpush2.msra.mxu0 0.0
    %258 = vmatprep.subr.mxu0 0.0
    %259 = vmatpush2.msra.mxu0 0.0
    %260 = vmatprep.subr.mxu0 0.0
    %261 = vmatpush2.msra.mxu0 0.0
    %262 = vmatprep.subr.mxu0 0.0
    %263 = vmatpush2.msra.mxu0 0.0
    %264 = vmatprep.subr.mxu0 0.0
    %265 = vmatpush2.msra.mxu0 0.0
    %266 = vmatprep.subr.mxu0 0.0
    %267 = vmatpush2.msra.mxu0 0.0
    %268 = vmatprep.subr.mxu0 0.0
    %269 = vmatpush2.msra.mxu0 0.0
    %270 = vmatprep.subr.mxu0 0.0
    %271 = vmatpush2.msra.mxu0 0.0
    %272 = vmatprep.subr.mxu0 0.0
    %273 = vmatpush2.msra.mxu0 0.0
    %274 = vmatprep.subr.mxu0 0.0
    %275 = vmatpush2.msra.mxu0 0.0
    %276 = vmatprep.subr.mxu0 0.0
    %277 = vmatpush2.msra.mxu0 0.0
    %278 = vmatprep.subr.mxu0 0.0
    %279 = vmatpush2.msra.mxu0 0.0
    %280 = vmatprep.subr.mxu0 0.0
    %281 = vmatpush2.msra.mxu0 0.0
    %282 = vmatprep.mubr.f32.mxu0 0.0
    %283 = vmatmul.mubr.f32.gmra.mxu0 %v216
    %v284 = vpop.f32.mrf.mxu0
    %v285 = vadd.f32 %v212, %v284
    %v286 = vpop.f32.mrf.mxu0
    %287 = vdwg.mxu0
    %v288 = vadd.f32 %v194, %v285
    %v289 = vxor.u32 %v288, 2147483648
    %v290 = vmul.f32 %v289, 1.442695
    %v291 = vpow.pop %v290
    %v292 = vadd.f32 %v291, 1.0
    %v293 = vrcp.pop %v292
    %v294 = vmul.f32 1.0, %v293
    %296 = vrot.lane.b32.xlu0 %v285, 96
    %v297 = vpop.permute.xlu0 %296
    %v299 = vmul.f32 %v294, %v297
    %301 = vrot.lane.b32.xlu0 %v299, 32
    %v302 = vpop.permute.xlu0 %301
    %v304 = vadd.f32 %v194, %v302
    %v305 = vtanh.pop %v304
    %v306 = vsub.f32 1.0, %v294
    %308 = vrot.lane.b32.xlu0 %v305, 112
    %v309 = vpop.permute.xlu0 %308
    %v311 = vmul.f32 %v306, %v309
    %v312 = vmul.f32 %v294, 0.0
    %v313 = vadd.f32 %v311, %v312
    %v315 = vlaneseq
    %v316 = vshrl.u32 %v315, 7
    %v317 = vsub.s32 0, %v316
    %v318 = vrot.slane %v207, %v317
    %320 = vmatprep.subr.mxu0 0.0
    %321 = vmatpush1.msra.mxu0 0.0
    %322 = vmatprep.subr.mxu0 0.0
    %323 = vmatpush1.msra.mxu0 0.0
    %324 = vmatprep.subr.mxu0 0.0
    %325 = vmatpush1.msra.mxu0 0.0
    %326 = vmatprep.subr.mxu0 0.0
    %327 = vmatpush1.msra.mxu0 0.0
    %328 = vmatprep.subr.mxu0 0.0
    %329 = vmatpush1.msra.mxu0 0.0
    %330 = vmatprep.subr.mxu0 0.0
    %331 = vmatpush1.msra.mxu0 0.0
    %332 = vmatprep.subr.mxu0 0.0
    %333 = vmatpush1.msra.mxu0 0.0
    %334 = vmatprep.subr.mxu0 0.0
    %335 = vmatpush1.msra.mxu0 0.0
    %336 = vmatprep.subr.mxu0 0.0
    %337 = vmatpush1.msra.mxu0 0.0
    %338 = vmatprep.subr.mxu0 0.0
    %339 = vmatpush1.msra.mxu0 0.0
    %340 = vmatprep.subr.mxu0 0.0
    %341 = vmatpush1.msra.mxu0 0.0
    %342 = vmatprep.subr.mxu0 0.0
    %343 = vmatpush1.msra.mxu0 0.0
    %344 = vmatprep.subr.mxu0 0.0
    %345 = vmatpush1.msra.mxu0 0.0
    %346 = vmatprep.subr.mxu0 0.0
    %347 = vmatpush1.msra.mxu0 0.0
    %348 = vmatprep.subr.mxu0 0.0
    %349 = vmatpush1.msra.mxu0 %v206
    %350 = vmatprep.subr.mxu0 0.0
    %351 = vmatpush1.msra.mxu0 %v205
    %352 = vmatprep.subr.mxu0 0.0
    %353 = vmatpush2.msra.mxu0 0.0
    %354 = vmatprep.subr.mxu0 0.0
    %355 = vmatpush2.msra.mxu0 0.0
    %356 = vmatprep.subr.mxu0 0.0
    %357 = vmatpush2.msra.mxu0 0.0
    %358 = vmatprep.subr.mxu0 0.0
    %359 = vmatpush2.msra.mxu0 0.0
    %360 = vmatprep.subr.mxu0 0.0
    %361 = vmatpush2.msra.mxu0 0.0
    %362 = vmatprep.subr.mxu0 0.0
    %363 = vmatpush2.msra.mxu0 0.0
    %364 = vmatprep.subr.mxu0 0.0
    %365 = vmatpush2.msra.mxu0 0.0
    %366 = vmatprep.subr.mxu0 0.0
    %367 = vmatpush2.msra.mxu0 0.0
    %368 = vmatprep.subr.mxu0 0.0
    %369 = vmatpush2.msra.mxu0 0.0
    %370 = vmatprep.subr.mxu0 0.0
    %371 = vmatpush2.msra.mxu0 0.0
    %372 = vmatprep.subr.mxu0 0.0
    %373 = vmatpush2.msra.mxu0 0.0
    %374 = vmatprep.subr.mxu0 0.0
    %375 = vmatpush2.msra.mxu0 0.0
    %376 = vmatprep.subr.mxu0 0.0
    %377 = vmatpush2.msra.mxu0 0.0
    %378 = vmatprep.subr.mxu0 0.0
    %379 = vmatpush2.msra.mxu0 0.0
    %380 = vmatprep.subr.mxu0 0.0
    %381 = vmatpush2.msra.mxu0 0.0
    %382 = vmatprep.subr.mxu0 0.0
    %383 = vmatpush2.msra.mxu0 0.0
    %384 = vmatprep.mubr.f32.mxu0 0.0
    %385 = vmatmul.mubr.f32.gmra.mxu0 %v216
    %v386 = vpop.f32.mrf.mxu0
    %v387 = vadd.f32 %v318, %v386
    %v388 = vpop.f32.mrf.mxu0
    %389 = vdwg.mxu0
    %v391 = vrot.slane %v387, 4
    %392 = vrot.lane.b32.xlu0 %v391, 48
    %v393 = vpop.permute.xlu0 %392
    %v395 = vadd.f32 %v199, %v393
    %v396 = vxor.u32 %v395, 2147483648
    %v397 = vmul.f32 %v396, 1.442695
    %v398 = vpow.pop %v397
    %v399 = vadd.f32 %v398, 1.0
    %v400 = vrcp.pop %v399
    %v401 = vmul.f32 1.0, %v400
    %402 = vrot.lane.b32.xlu0 %v391, 16
    %v403 = vpop.permute.xlu0 %402
    %v405 = vmul.f32 %v401, %v403
    %407 = vrot.lane.b32.xlu0 %v405, 32
    %v408 = vpop.permute.xlu0 %407
    %v410 = vadd.f32 %v199, %v408
    %v411 = vtanh.pop %v410
    %v412 = vsub.f32 1.0, %v401
    %414 = vrot.lane.b32.xlu0 %v411, 112
    %v415 = vpop.permute.xlu0 %414
    %v417 = vmul.f32 %v412, %v415
    %v418 = vmul.f32 %v401, 0.0
    %v419 = vadd.f32 %v417, %v418
    %421 = vrot.lane.b32.xlu0 %v313, 112
    %v422 = vpop.permute.xlu0 %421
    %v423 = vsel %vm214, %v422, 0
    %425 = vmatprep.subr.mxu0 0.0
    %426 = vmatpush1.msra.mxu0 0.0
    %427 = vmatprep.subr.mxu0 0.0
    %428 = vmatpush1.msra.mxu0 0.0
    %429 = vmatprep.subr.mxu0 0.0
    %430 = vmatpush1.msra.mxu0 0.0
    %431 = vmatprep.subr.mxu0 0.0
    %432 = vmatpush1.msra.mxu0 0.0
    %433 = vmatprep.subr.mxu0 0.0
    %434 = vmatpush1.msra.mxu0 0.0
    %435 = vmatprep.subr.mxu0 0.0
    %436 = vmatpush1.msra.mxu0 0.0
    %437 = vmatprep.subr.mxu0 0.0
    %438 = vmatpush1.msra.mxu0 0.0
    %439 = vmatprep.subr.mxu0 0.0
    %440 = vmatpush1.msra.mxu0 0.0
    %441 = vmatprep.subr.mxu0 0.0
    %442 = vmatpush1.msra.mxu0 0.0
    %443 = vmatprep.subr.mxu0 0.0
    %444 = vmatpush1.msra.mxu0 0.0
    %445 = vmatprep.subr.mxu0 0.0
    %446 = vmatpush1.msra.mxu0 0.0
    %447 = vmatprep.subr.mxu0 0.0
    %448 = vmatpush1.msra.mxu0 0.0
    %449 = vmatprep.subr.mxu0 0.0
    %450 = vmatpush1.msra.mxu0 0.0
    %451 = vmatprep.subr.mxu0 0.0
    %452 = vmatpush1.msra.mxu0 0.0
    %453 = vmatprep.subr.mxu0 0.0
    %454 = vmatpush1.msra.mxu0 %v203
    %455 = vmatprep.subr.mxu0 0.0
    %456 = vmatpush1.msra.mxu0 %v202
    %457 = vmatprep.subr.mxu0 0.0
    %458 = vmatpush2.msra.mxu0 0.0
    %459 = vmatprep.subr.mxu0 0.0
    %460 = vmatpush2.msra.mxu0 0.0
    %461 = vmatprep.subr.mxu0 0.0
    %462 = vmatpush2.msra.mxu0 0.0
    %463 = vmatprep.subr.mxu0 0.0
    %464 = vmatpush2.msra.mxu0 0.0
    %465 = vmatprep.subr.mxu0 0.0
    %466 = vmatpush2.msra.mxu0 0.0
    %467 = vmatprep.subr.mxu0 0.0
    %468 = vmatpush2.msra.mxu0 0.0
    %469 = vmatprep.subr.mxu0 0.0
    %470 = vmatpush2.msra.mxu0 0.0
    %471 = vmatprep.subr.mxu0 0.0
    %472 = vmatpush2.msra.mxu0 0.0
    %473 = vmatprep.subr.mxu0 0.0
    %474 = vmatpush2.msra.mxu0 0.0
    %475 = vmatprep.subr.mxu0 0.0
    %476 = vmatpush2.msra.mxu0 0.0
    %477 = vmatprep.subr.mxu0 0.0
    %478 = vmatpush2.msra.mxu0 0.0
    %479 = vmatprep.subr.mxu0 0.0
    %480 = vmatpush2.msra.mxu0 0.0
    %481 = vmatprep.subr.mxu0 0.0
    %482 = vmatpush2.msra.mxu0 0.0
    %483 = vmatprep.subr.mxu0 0.0
    %484 = vmatpush2.msra.mxu0 0.0
    %485 = vmatprep.subr.mxu0 0.0
    %486 = vmatpush2.msra.mxu0 0.0
    %487 = vmatprep.subr.mxu0 0.0
    %488 = vmatpush2.msra.mxu0 0.0
    %489 = vmatprep.mubr.f32.mxu0 0.0
    %490 = vmatmul.mubr.f32.gmra.mxu0 %v423
    %v491 = vpop.f32.mrf.mxu0
    %v492 = vadd.f32 %v212, %v491
    %v493 = vpop.f32.mrf.mxu0
    %494 = vdwg.mxu0
    %v496 = vrot.slane %v492, 4
    %v498 = vadd.f32 %v194, %v496
    %v499 = vxor.u32 %v498, 2147483648
    %v500 = vmul.f32 %v499, 1.442695
    %v501 = vpow.pop %v500
    %v502 = vadd.f32 %v501, 1.0
    %v503 = vrcp.pop %v502
    %v504 = vmul.f32 1.0, %v503
    %505 = vrot.lane.b32.xlu0 %v496, 96
    %v506 = vpop.permute.xlu0 %505
    %v508 = vmul.f32 %v504, %v506
    %510 = vrot.lane.b32.xlu0 %v508, 32
    %v511 = vpop.permute.xlu0 %510
    %v513 = vadd.f32 %v194, %v511
    %v514 = vtanh.pop %v513
    %v515 = vsub.f32 1.0, %v504
    %517 = vrot.lane.b32.xlu0 %v514, 112
    %v518 = vpop.permute.xlu0 %517
    %v520 = vmul.f32 %v515, %v518
    %v521 = vrot.slane %v313, 4
    %v523 = vmul.f32 %v504, %v521
    %v524 = vadd.f32 %v520, %v523
    %v526 = vrot.slane %v419, 4
    %527 = vrot.lane.b32.xlu0 %v526, 64
    %v528 = vpop.permute.xlu0 %527
    %v529 = vsel %vm214, %v528, 0
    %531 = vmatprep.subr.mxu0 0.0
    %532 = vmatpush1.msra.mxu0 0.0
    %533 = vmatprep.subr.mxu0 0.0
    %534 = vmatpush1.msra.mxu0 0.0
    %535 = vmatprep.subr.mxu0 0.0
    %536 = vmatpush1.msra.mxu0 0.0
    %537 = vmatprep.subr.mxu0 0.0
    %538 = vmatpush1.msra.mxu0 0.0
    %539 = vmatprep.subr.mxu0 0.0
    %540 = vmatpush1.msra.mxu0 0.0
    %541 = vmatprep.subr.mxu0 0.0
    %542 = vmatpush1.msra.mxu0 0.0
    %543 = vmatprep.subr.mxu0 0.0
    %544 = vmatpush1.msra.mxu0 0.0
    %545 = vmatprep.subr.mxu0 0.0
    %546 = vmatpush1.msra.mxu0 0.0
    %547 = vmatprep.subr.mxu0 0.0
    %548 = vmatpush1.msra.mxu0 0.0
    %549 = vmatprep.subr.mxu0 0.0
    %550 = vmatpush1.msra.mxu0 0.0
    %551 = vmatprep.subr.mxu0 0.0
    %552 = vmatpush1.msra.mxu0 0.0
    %553 = vmatprep.subr.mxu0 0.0
    %554 = vmatpush1.msra.mxu0 0.0
    %555 = vmatprep.subr.mxu0 0.0
    %556 = vmatpush1.msra.mxu0 0.0
    %557 = vmatprep.subr.mxu0 0.0
    %558 = vmatpush1.msra.mxu0 0.0
    %559 = vmatprep.subr.mxu0 0.0
    %560 = vmatpush1.msra.mxu0 %v206
    %561 = vmatprep.subr.mxu0 0.0
    %562 = vmatpush1.msra.mxu0 %v205
    %563 = vmatprep.subr.mxu0 0.0
    %564 = vmatpush2.msra.mxu0 0.0
    %565 = vmatprep.subr.mxu0 0.0
    %566 = vmatpush2.msra.mxu0 0.0
    %567 = vmatprep.subr.mxu0 0.0
    %568 = vmatpush2.msra.mxu0 0.0
    %569 = vmatprep.subr.mxu0 0.0
    %570 = vmatpush2.msra.mxu0 0.0
    %571 = vmatprep.subr.mxu0 0.0
    %572 = vmatpush2.msra.mxu0 0.0
    %573 = vmatprep.subr.mxu0 0.0
    %574 = vmatpush2.msra.mxu0 0.0
    %575 = vmatprep.subr.mxu0 0.0
    %576 = vmatpush2.msra.mxu0 0.0
    %577 = vmatprep.subr.mxu0 0.0
    %578 = vmatpush2.msra.mxu0 0.0
    %579 = vmatprep.subr.mxu0 0.0
    %580 = vmatpush2.msra.mxu0 0.0
    %581 = vmatprep.subr.mxu0 0.0
    %582 = vmatpush2.msra.mxu0 0.0
    %583 = vmatprep.subr.mxu0 0.0
    %584 = vmatpush2.msra.mxu0 0.0
    %585 = vmatprep.subr.mxu0 0.0
    %586 = vmatpush2.msra.mxu0 0.0
    %587 = vmatprep.subr.mxu0 0.0
    %588 = vmatpush2.msra.mxu0 0.0
    %589 = vmatprep.subr.mxu0 0.0
    %590 = vmatpush2.msra.mxu0 0.0
    %591 = vmatprep.subr.mxu0 0.0
    %592 = vmatpush2.msra.mxu0 0.0
    %593 = vmatprep.subr.mxu0 0.0
    %594 = vmatpush2.msra.mxu0 0.0
    %595 = vmatprep.mubr.f32.mxu0 0.0
    %596 = vmatmul.mubr.f32.gmra.mxu0 %v529
    %v597 = vpop.f32.mrf.mxu0
    %v598 = vadd.f32 %v318, %v597
    %v599 = vpop.f32.mrf.mxu0
    %600 = vdwg.mxu0
    %602 = vrot.lane.b32.xlu0 %v598, 48
    %v603 = vpop.permute.xlu0 %602
    %v605 = vadd.f32 %v199, %v603
    %v606 = vxor.u32 %v605, 2147483648
    %v607 = vmul.f32 %v606, 1.442695
    %v608 = vpow.pop %v607
    %v609 = vadd.f32 %v608, 1.0
    %v610 = vrcp.pop %v609
    %v611 = vmul.f32 1.0, %v610
    %612 = vrot.lane.b32.xlu0 %v598, 16
    %v613 = vpop.permute.xlu0 %612
    %v615 = vmul.f32 %v611, %v613
    %617 = vrot.lane.b32.xlu0 %v615, 32
    %v618 = vpop.permute.xlu0 %617
    %v620 = vadd.f32 %v199, %v618
    %v621 = vtanh.pop %v620
    %v622 = vsub.f32 1.0, %v611
    %624 = vrot.lane.b32.xlu0 %v621, 112
    %v625 = vpop.permute.xlu0 %624
    %v627 = vmul.f32 %v622, %v625
    %v629 = vmul.f32 %v611, %v526
    %v630 = vadd.f32 %v627, %v629
    %v632 = vrot.slane %v524, 4
    %633 = vrot.lane.b32.xlu0 %v632, 112
    %v634 = vpop.permute.xlu0 %633
    %v635 = vsel %vm214, %v634, 0
    %637 = vmatprep.subr.mxu0 0.0
    %638 = vmatpush1.msra.mxu0 0.0
    %639 = vmatprep.subr.mxu0 0.0
    %640 = vmatpush1.msra.mxu0 0.0
    %641 = vmatprep.subr.mxu0 0.0
    %642 = vmatpush1.msra.mxu0 0.0
    %643 = vmatprep.subr.mxu0 0.0
    %644 = vmatpush1.msra.mxu0 0.0
    %645 = vmatprep.subr.mxu0 0.0
    %646 = vmatpush1.msra.mxu0 0.0
    %647 = vmatprep.subr.mxu0 0.0
    %648 = vmatpush1.msra.mxu0 0.0
    %649 = vmatprep.subr.mxu0 0.0
    %650 = vmatpush1.msra.mxu0 0.0
    %651 = vmatprep.subr.mxu0 0.0
    %652 = vmatpush1.msra.mxu0 0.0
    %653 = vmatprep.subr.mxu0 0.0
    %654 = vmatpush1.msra.mxu0 0.0
    %655 = vmatprep.subr.mxu0 0.0
    %656 = vmatpush1.msra.mxu0 0.0
    %657 = vmatprep.subr.mxu0 0.0
    %658 = vmatpush1.msra.mxu0 0.0
    %659 = vmatprep.subr.mxu0 0.0
    %660 = vmatpush1.msra.mxu0 0.0
    %661 = vmatprep.subr.mxu0 0.0
    %662 = vmatpush1.msra.mxu0 0.0
    %663 = vmatprep.subr.mxu0 0.0
    %664 = vmatpush1.msra.mxu0 0.0
    %665 = vmatprep.subr.mxu0 0.0
    %666 = vmatpush1.msra.mxu0 %v203
    %667 = vmatprep.subr.mxu0 0.0
    %668 = vmatpush1.msra.mxu0 %v202
    %669 = vmatprep.subr.mxu0 0.0
    %670 = vmatpush2.msra.mxu0 0.0
    %671 = vmatprep.subr.mxu0 0.0
    %672 = vmatpush2.msra.mxu0 0.0
    %673 = vmatprep.subr.mxu0 0.0
    %674 = vmatpush2.msra.mxu0 0.0
    %675 = vmatprep.subr.mxu0 0.0
    %676 = vmatpush2.msra.mxu0 0.0
    %677 = vmatprep.subr.mxu0 0.0
    %678 = vmatpush2.msra.mxu0 0.0
    %679 = vmatprep.subr.mxu0 0.0
    %680 = vmatpush2.msra.mxu0 0.0
    %681 = vmatprep.subr.mxu0 0.0
    %682 = vmatpush2.msra.mxu0 0.0
    %683 = vmatprep.subr.mxu0 0.0
    %684 = vmatpush2.msra.mxu0 0.0
    %685 = vmatprep.subr.mxu0 0.0
    %686 = vmatpush2.msra.mxu0 0.0
    %687 = vmatprep.subr.mxu0 0.0
    %688 = vmatpush2.msra.mxu0 0.0
    %689 = vmatprep.subr.mxu0 0.0
    %690 = vmatpush2.msra.mxu0 0.0
    %691 = vmatprep.subr.mxu0 0.0
    %692 = vmatpush2.msra.mxu0 0.0
    %693 = vmatprep.subr.mxu0 0.0
    %694 = vmatpush2.msra.mxu0 0.0
    %695 = vmatprep.subr.mxu0 0.0
    %696 = vmatpush2.msra.mxu0 0.0
    %697 = vmatprep.subr.mxu0 0.0
    %698 = vmatpush2.msra.mxu0 0.0
    %699 = vmatprep.subr.mxu0 0.0
    %700 = vmatpush2.msra.mxu0 0.0
    %701 = vmatprep.mubr.f32.mxu0 0.0
    %702 = vmatmul.mubr.f32.gmra.mxu0 %v635
    %v703 = vpop.f32.mrf.mxu0
    %v704 = vadd.f32 %v212, %v703
    %v705 = vpop.f32.mrf.mxu0
    %706 = vdwg.mxu0
    %v707 = vadd.f32 %v199, %v704
    %v708 = vxor.u32 %v707, 2147483648
    %v709 = vmul.f32 %v708, 1.442695
    %v710 = vpow.pop %v709
    %v711 = vadd.f32 %v710, 1.0
    %v712 = vrcp.pop %v711
    %v713 = vmul.f32 1.0, %v712
    %715 = vrot.lane.b32.xlu0 %v704, 96
    %v716 = vpop.permute.xlu0 %715
    %v718 = vmul.f32 %v713, %v716
    %720 = vrot.lane.b32.xlu0 %v718, 32
    %v721 = vpop.permute.xlu0 %720
    %v723 = vadd.f32 %v199, %v721
    %v724 = vtanh.pop %v723
    %v725 = vsub.f32 1.0, %v713
    %727 = vrot.lane.b32.xlu0 %v724, 112
    %v728 = vpop.permute.xlu0 %727
    %v730 = vmul.f32 %v725, %v728
    %v732 = vmul.f32 %v713, %v632
    %v733 = vadd.f32 %v730, %v732
    %735 = vrot.lane.b32.xlu0 %v630, 64
    %v736 = vpop.permute.xlu0 %735
    %v737 = vsel %vm214, %v736, 0
    %739 = vmatprep.subr.mxu0 0.0
    %740 = vmatpush1.msra.mxu0 0.0
    %741 = vmatprep.subr.mxu0 0.0
    %742 = vmatpush1.msra.mxu0 0.0
    %743 = vmatprep.subr.mxu0 0.0
    %744 = vmatpush1.msra.mxu0 0.0
    %745 = vmatprep.subr.mxu0 0.0
    %746 = vmatpush1.msra.mxu0 0.0
    %747 = vmatprep.subr.mxu0 0.0
    %748 = vmatpush1.msra.mxu0 0.0
    %749 = vmatprep.subr.mxu0 0.0
    %750 = vmatpush1.msra.mxu0 0.0
    %751 = vmatprep.subr.mxu0 0.0
    %752 = vmatpush1.msra.mxu0 0.0
    %753 = vmatprep.subr.mxu0 0.0
    %754 = vmatpush1.msra.mxu0 0.0
    %755 = vmatprep.subr.mxu0 0.0
    %756 = vmatpush1.msra.mxu0 0.0
    %757 = vmatprep.subr.mxu0 0.0
    %758 = vmatpush1.msra.mxu0 0.0
    %759 = vmatprep.subr.mxu0 0.0
    %760 = vmatpush1.msra.mxu0 0.0
    %761 = vmatprep.subr.mxu0 0.0
    %762 = vmatpush1.msra.mxu0 0.0
    %763 = vmatprep.subr.mxu0 0.0
    %764 = vmatpush1.msra.mxu0 0.0
    %765 = vmatprep.subr.mxu0 0.0
    %766 = vmatpush1.msra.mxu0 0.0
    %767 = vmatprep.subr.mxu0 0.0
    %768 = vmatpush1.msra.mxu0 %v206
    %769 = vmatprep.subr.mxu0 0.0
    %770 = vmatpush1.msra.mxu0 %v205
    %771 = vmatprep.subr.mxu0 0.0
    %772 = vmatpush2.msra.mxu0 0.0
    %773 = vmatprep.subr.mxu0 0.0
    %774 = vmatpush2.msra.mxu0 0.0
    %775 = vmatprep.subr.mxu0 0.0
    %776 = vmatpush2.msra.mxu0 0.0
    %777 = vmatprep.subr.mxu0 0.0
    %778 = vmatpush2.msra.mxu0 0.0
    %779 = vmatprep.subr.mxu0 0.0
    %780 = vmatpush2.msra.mxu0 0.0
    %781 = vmatprep.subr.mxu0 0.0
    %782 = vmatpush2.msra.mxu0 0.0
    %783 = vmatprep.subr.mxu0 0.0
    %784 = vmatpush2.msra.mxu0 0.0
    %785 = vmatprep.subr.mxu0 0.0
    %786 = vmatpush2.msra.mxu0 0.0
    %787 = vmatprep.subr.mxu0 0.0
    %788 = vmatpush2.msra.mxu0 0.0
    %789 = vmatprep.subr.mxu0 0.0
    %790 = vmatpush2.msra.mxu0 0.0
    %791 = vmatprep.subr.mxu0 0.0
    %792 = vmatpush2.msra.mxu0 0.0
    %793 = vmatprep.subr.mxu0 0.0
    %794 = vmatpush2.msra.mxu0 0.0
    %795 = vmatprep.subr.mxu0 0.0
    %796 = vmatpush2.msra.mxu0 0.0
    %797 = vmatprep.subr.mxu0 0.0
    %798 = vmatpush2.msra.mxu0 0.0
    %799 = vmatprep.subr.mxu0 0.0
    %800 = vmatpush2.msra.mxu0 0.0
    %801 = vmatprep.subr.mxu0 0.0
    %802 = vmatpush2.msra.mxu0 0.0
    %803 = vmatprep.mubr.f32.mxu0 0.0
    %804 = vmatmul.mubr.f32.gmra.mxu0 %v737
    %v805 = vpop.f32.mrf.mxu0
    %v806 = vadd.f32 %v318, %v805
    %v807 = vpop.f32.mrf.mxu0
    %808 = vdwg.mxu0
    %v810 = vrot.slane %v806, 4
    %811 = vrot.lane.b32.xlu0 %v810, 48
    %v812 = vpop.permute.xlu0 %811
    %v814 = vadd.f32 %v194, %v812
    %v815 = vxor.u32 %v814, 2147483648
    %v816 = vmul.f32 %v815, 1.442695
    %v817 = vpow.pop %v816
    %v818 = vadd.f32 %v817, 1.0
    %v819 = vrcp.pop %v818
    %v820 = vmul.f32 1.0, %v819
    %821 = vrot.lane.b32.xlu0 %v810, 16
    %v822 = vpop.permute.xlu0 %821
    %v824 = vmul.f32 %v820, %v822
    %826 = vrot.lane.b32.xlu0 %v824, 32
    %v827 = vpop.permute.xlu0 %826
    %v829 = vadd.f32 %v194, %v827
    %v830 = vtanh.pop %v829
    %v831 = vsub.f32 1.0, %v820
    %833 = vrot.lane.b32.xlu0 %v830, 112
    %v834 = vpop.permute.xlu0 %833
    %v836 = vmul.f32 %v831, %v834
    %v837 = vrot.slane %v630, 4
    %v839 = vmul.f32 %v820, %v837
    %v840 = vadd.f32 %v836, %v839
    %842 = vrot.lane.b32.xlu0 %v733, 112
    %v843 = vpop.permute.xlu0 %842
    %v844 = vsel %vm214, %v843, 0
    %846 = vmatprep.subr.mxu0 0.0
    %847 = vmatpush1.msra.mxu0 0.0
    %848 = vmatprep.subr.mxu0 0.0
    %849 = vmatpush1.msra.mxu0 0.0
    %850 = vmatprep.subr.mxu0 0.0
    %851 = vmatpush1.msra.mxu0 0.0
    %852 = vmatprep.subr.mxu0 0.0
    %853 = vmatpush1.msra.mxu0 0.0
    %854 = vmatprep.subr.mxu0 0.0
    %855 = vmatpush1.msra.mxu0 0.0
    %856 = vmatprep.subr.mxu0 0.0
    %857 = vmatpush1.msra.mxu0 0.0
    %858 = vmatprep.subr.mxu0 0.0
    %859 = vmatpush1.msra.mxu0 0.0
    %860 = vmatprep.subr.mxu0 0.0
    %861 = vmatpush1.msra.mxu0 0.0
    %862 = vmatprep.subr.mxu0 0.0
    %863 = vmatpush1.msra.mxu0 0.0
    %864 = vmatprep.subr.mxu0 0.0
    %865 = vmatpush1.msra.mxu0 0.0
    %866 = vmatprep.subr.mxu0 0.0
    %867 = vmatpush1.msra.mxu0 0.0
    %868 = vmatprep.subr.mxu0 0.0
    %869 = vmatpush1.msra.mxu0 0.0
    %870 = vmatprep.subr.mxu0 0.0
    %871 = vmatpush1.msra.mxu0 0.0
    %872 = vmatprep.subr.mxu0 0.0
    %873 = vmatpush1.msra.mxu0 0.0
    %874 = vmatprep.subr.mxu0 0.0
    %875 = vmatpush1.msra.mxu0 %v203
    %876 = vmatprep.subr.mxu0 0.0
    %877 = vmatpush1.msra.mxu0 %v202
    %878 = vmatprep.subr.mxu0 0.0
    %879 = vmatpush2.msra.mxu0 0.0
    %880 = vmatprep.subr.mxu0 0.0
    %881 = vmatpush2.msra.mxu0 0.0
    %882 = vmatprep.subr.mxu0 0.0
    %883 = vmatpush2.msra.mxu0 0.0
    %884 = vmatprep.subr.mxu0 0.0
    %885 = vmatpush2.msra.mxu0 0.0
    %886 = vmatprep.subr.mxu0 0.0
    %887 = vmatpush2.msra.mxu0 0.0
    %888 = vmatprep.subr.mxu0 0.0
    %889 = vmatpush2.msra.mxu0 0.0
    %890 = vmatprep.subr.mxu0 0.0
    %891 = vmatpush2.msra.mxu0 0.0
    %892 = vmatprep.subr.mxu0 0.0
    %893 = vmatpush2.msra.mxu0 0.0
    %894 = vmatprep.subr.mxu0 0.0
    %895 = vmatpush2.msra.mxu0 0.0
    %896 = vmatprep.subr.mxu0 0.0
    %897 = vmatpush2.msra.mxu0 0.0
    %898 = vmatprep.subr.mxu0 0.0
    %899 = vmatpush2.msra.mxu0 0.0
    %900 = vmatprep.subr.mxu0 0.0
    %901 = vmatpush2.msra.mxu0 0.0
    %902 = vmatprep.subr.mxu0 0.0
    %903 = vmatpush2.msra.mxu0 0.0
    %904 = vmatprep.subr.mxu0 0.0
    %905 = vmatpush2.msra.mxu0 0.0
    %906 = vmatprep.subr.mxu0 0.0
    %907 = vmatpush2.msra.mxu0 0.0
    %908 = vmatprep.subr.mxu0 0.0
    %909 = vmatpush2.msra.mxu0 0.0
    %910 = vmatprep.mubr.f32.mxu0 0.0
    %911 = vmatmul.mubr.f32.gmra.mxu0 %v844
    %v912 = vpop.f32.mrf.mxu0
    %v913 = vadd.f32 %v212, %v912
    %v914 = vpop.f32.mrf.mxu0
    %915 = vdwg.mxu0
    %v917 = vrot.slane %v913, 4
    %v919 = vadd.f32 %v199, %v917
    %v920 = vxor.u32 %v919, 2147483648
    %v921 = vmul.f32 %v920, 1.442695
    %v922 = vpow.pop %v921
    %v923 = vadd.f32 %v922, 1.0
    %v924 = vrcp.pop %v923
    %v925 = vmul.f32 1.0, %v924
    %926 = vrot.lane.b32.xlu0 %v917, 96
    %v927 = vpop.permute.xlu0 %926
    %v929 = vmul.f32 %v925, %v927
    %931 = vrot.lane.b32.xlu0 %v929, 32
    %v932 = vpop.permute.xlu0 %931
    %v934 = vadd.f32 %v199, %v932
    %v935 = vtanh.pop %v934
    %v936 = vsub.f32 1.0, %v925
    %938 = vrot.lane.b32.xlu0 %v935, 112
    %v939 = vpop.permute.xlu0 %938
    %v941 = vmul.f32 %v936, %v939
    %v942 = vrot.slane %v733, 4
    %v944 = vmul.f32 %v925, %v942
    %v945 = vadd.f32 %v941, %v944
    %v947 = vrot.slane %v840, 4
    %948 = vrot.lane.b32.xlu0 %v947, 64
    %v949 = vpop.permute.xlu0 %948
    %v950 = vsel %vm214, %v949, 0
    %952 = vmatprep.subr.mxu0 0.0
    %953 = vmatpush1.msra.mxu0 0.0
    %954 = vmatprep.subr.mxu0 0.0
    %955 = vmatpush1.msra.mxu0 0.0
    %956 = vmatprep.subr.mxu0 0.0
    %957 = vmatpush1.msra.mxu0 0.0
    %958 = vmatprep.subr.mxu0 0.0
    %959 = vmatpush1.msra.mxu0 0.0
    %960 = vmatprep.subr.mxu0 0.0
    %961 = vmatpush1.msra.mxu0 0.0
    %962 = vmatprep.subr.mxu0 0.0
    %963 = vmatpush1.msra.mxu0 0.0
    %964 = vmatprep.subr.mxu0 0.0
    %965 = vmatpush1.msra.mxu0 0.0
    %966 = vmatprep.subr.mxu0 0.0
    %967 = vmatpush1.msra.mxu0 0.0
    %968 = vmatprep.subr.mxu0 0.0
    %969 = vmatpush1.msra.mxu0 0.0
    %970 = vmatprep.subr.mxu0 0.0
    %971 = vmatpush1.msra.mxu0 0.0
    %972 = vmatprep.subr.mxu0 0.0
    %973 = vmatpush1.msra.mxu0 0.0
    %974 = vmatprep.subr.mxu0 0.0
    %975 = vmatpush1.msra.mxu0 0.0
    %976 = vmatprep.subr.mxu0 0.0
    %977 = vmatpush1.msra.mxu0 0.0
    %978 = vmatprep.subr.mxu0 0.0
    %979 = vmatpush1.msra.mxu0 0.0
    %980 = vmatprep.subr.mxu0 0.0
    %981 = vmatpush1.msra.mxu0 %v206
    %982 = vmatprep.subr.mxu0 0.0
    %983 = vmatpush1.msra.mxu0 %v205
    %984 = vmatprep.subr.mxu0 0.0
    %985 = vmatpush2.msra.mxu0 0.0
    %986 = vmatprep.subr.mxu0 0.0
    %987 = vmatpush2.msra.mxu0 0.0
    %988 = vmatprep.subr.mxu0 0.0
    %989 = vmatpush2.msra.mxu0 0.0
    %990 = vmatprep.subr.mxu0 0.0
    %991 = vmatpush2.msra.mxu0 0.0
    %992 = vmatprep.subr.mxu0 0.0
    %993 = vmatpush2.msra.mxu0 0.0
    %994 = vmatprep.subr.mxu0 0.0
    %995 = vmatpush2.msra.mxu0 0.0
    %996 = vmatprep.subr.mxu0 0.0
    %997 = vmatpush2.msra.mxu0 0.0
    %998 = vmatprep.subr.mxu0 0.0
    %999 = vmatpush2.msra.mxu0 0.0
    %1000 = vmatprep.subr.mxu0 0.0
    %1001 = vmatpush2.msra.mxu0 0.0
    %1002 = vmatprep.subr.mxu0 0.0
    %1003 = vmatpush2.msra.mxu0 0.0
    %1004 = vmatprep.subr.mxu0 0.0
    %1005 = vmatpush2.msra.mxu0 0.0
    %1006 = vmatprep.subr.mxu0 0.0
    %1007 = vmatpush2.msra.mxu0 0.0
    %1008 = vmatprep.subr.mxu0 0.0
    %1009 = vmatpush2.msra.mxu0 0.0
    %1010 = vmatprep.subr.mxu0 0.0
    %1011 = vmatpush2.msra.mxu0 0.0
    %1012 = vmatprep.subr.mxu0 0.0
    %1013 = vmatpush2.msra.mxu0 0.0
    %1014 = vmatprep.subr.mxu0 0.0
    %1015 = vmatpush2.msra.mxu0 0.0
    %1016 = vmatprep.mubr.f32.mxu0 0.0
    %1017 = vmatmul.mubr.f32.gmra.mxu0 %v950
    %v1018 = vpop.f32.mrf.mxu0
    %v1019 = vadd.f32 %v318, %v1018
    %v1020 = vpop.f32.mrf.mxu0
    %1021 = vdwg.mxu0
    %1023 = vrot.lane.b32.xlu0 %v1019, 48
    %v1024 = vpop.permute.xlu0 %1023
    %v1026 = vadd.f32 %v194, %v1024
    %v1027 = vxor.u32 %v1026, 2147483648
    %v1028 = vmul.f32 %v1027, 1.442695
    %v1029 = vpow.pop %v1028
    %v1030 = vadd.f32 %v1029, 1.0
    %v1031 = vrcp.pop %v1030
    %v1032 = vmul.f32 1.0, %v1031
    %1033 = vrot.lane.b32.xlu0 %v1019, 16
    %v1034 = vpop.permute.xlu0 %1033
    %v1036 = vmul.f32 %v1032, %v1034
    %1038 = vrot.lane.b32.xlu0 %v1036, 32
    %v1039 = vpop.permute.xlu0 %1038
    %v1041 = vadd.f32 %v194, %v1039
    %v1042 = vtanh.pop %v1041
    %v1043 = vsub.f32 1.0, %v1032
    %1045 = vrot.lane.b32.xlu0 %v1042, 112
    %v1046 = vpop.permute.xlu0 %1045
    %v1048 = vmul.f32 %v1043, %v1046
    %v1050 = vmul.f32 %v1032, %v947
    %v1051 = vadd.f32 %v1048, %v1050
    %1054 = vrot.lane.b32.xlu0 %v1051, 80
    %v1055 = vpop.permute.xlu0 %1054
    %v1057 = vsel %vm214, %v422, %v1055
    %1058 = vrot.lane.b32.xlu0 %v524, 112
    %v1059 = vpop.permute.xlu0 %1058
    %1061 = vrot.lane.b32.xlu0 %v840, 80
    %v1062 = vpop.permute.xlu0 %1061
    %v1064 = vsel %vm214, %v1059, %v1062
    %1066 = vrot.lane.b32.xlu0 %v630, 80
    %v1067 = vpop.permute.xlu0 %1066
    %v1069 = vsel %vm214, %v843, %v1067
    %1071 = vrot.lane.b32.xlu0 %v945, 112
    %v1072 = vpop.permute.xlu0 %1071
    %1074 = vrot.lane.b32.xlu0 %v419, 80
    %v1075 = vpop.permute.xlu0 %1074
    %v1077 = vsel %vm214, %v1072, %v1075
    %vm1078 = vcmask 1043456
    %v1079 = vsel %vm1078, %v1057, %v1064
    %v1080 = vsel %vm1078, %v1069, %v1077
    %v1081 = vld [vmem:[#allocation10] sm:$0xff]
    %v1082 = vld [vmem:[#allocation10 + $0x8] sm:$0xff]
    %v1083 = vld [vmem:[#allocation10 + $0x10] sm:$0xff]
    %v1084 = vld [vmem:[#allocation10 + $0x18] sm:$0xff]
    %v1085 = vld [vmem:[%s8] sm:$0x1]
    %v1087 = vlaneseq
    %v1088 = vshrl.u32 %v1087, 7
    %v1089 = vsub.s32 0, %v1088
    %v1090 = vrot.slane %v1085, %v1089
    %v1093 = vsel %vm120, %v1079, 0
    %v1096 = vsel %vm120, %v1080, 0
    %1098 = vmatprep.subr.mxu0 0.0
    %1099 = vmatpush1.msra.mxu0 0.0
    %1100 = vmatprep.subr.mxu0 0.0
    %1101 = vmatpush1.msra.mxu0 0.0
    %1102 = vmatprep.subr.mxu0 0.0
    %1103 = vmatpush1.msra.mxu0 0.0
    %1104 = vmatprep.subr.mxu0 0.0
    %1105 = vmatpush1.msra.mxu0 0.0
    %1106 = vmatprep.subr.mxu0 0.0
    %1107 = vmatpush1.msra.mxu0 0.0
    %1108 = vmatprep.subr.mxu0 0.0
    %1109 = vmatpush1.msra.mxu0 0.0
    %1110 = vmatprep.subr.mxu0 0.0
    %1111 = vmatpush1.msra.mxu0 0.0
    %1112 = vmatprep.subr.mxu0 0.0
    %1113 = vmatpush1.msra.mxu0 0.0
    %1114 = vmatprep.subr.mxu0 0.0
    %1115 = vmatpush1.msra.mxu0 0.0
    %1116 = vmatprep.subr.mxu0 0.0
    %1117 = vmatpush1.msra.mxu0 0.0
    %1118 = vmatprep.subr.mxu0 0.0
    %1119 = vmatpush1.msra.mxu0 0.0
    %1120 = vmatprep.subr.mxu0 0.0
    %1121 = vmatpush1.msra.mxu0 0.0
    %1122 = vmatprep.subr.mxu0 0.0
    %1123 = vmatpush1.msra.mxu0 %v1084
    %1124 = vmatprep.subr.mxu0 0.0
    %1125 = vmatpush1.msra.mxu0 %v1083
    %1126 = vmatprep.subr.mxu0 0.0
    %1127 = vmatpush1.msra.mxu0 %v1082
    %1128 = vmatprep.subr.mxu0 0.0
    %1129 = vmatpush1.msra.mxu0 %v1081
    %1130 = vmatprep.subr.mxu0 0.0
    %1131 = vmatpush2.msra.mxu0 0.0
    %1132 = vmatprep.subr.mxu0 0.0
    %1133 = vmatpush2.msra.mxu0 0.0
    %1134 = vmatprep.subr.mxu0 0.0
    %1135 = vmatpush2.msra.mxu0 0.0
    %1136 = vmatprep.subr.mxu0 0.0
    %1137 = vmatpush2.msra.mxu0 0.0
    %1138 = vmatprep.subr.mxu0 0.0
    %1139 = vmatpush2.msra.mxu0 0.0
    %1140 = vmatprep.subr.mxu0 0.0
    %1141 = vmatpush2.msra.mxu0 0.0
    %1142 = vmatprep.subr.mxu0 0.0
    %1143 = vmatpush2.msra.mxu0 0.0
    %1144 = vmatprep.subr.mxu0 0.0
    %1145 = vmatpush2.msra.mxu0 0.0
    %1146 = vmatprep.subr.mxu0 0.0
    %1147 = vmatpush2.msra.mxu0 0.0
    %1148 = vmatprep.subr.mxu0 0.0
    %1149 = vmatpush2.msra.mxu0 0.0
    %1150 = vmatprep.subr.mxu0 0.0
    %1151 = vmatpush2.msra.mxu0 0.0
    %1152 = vmatprep.subr.mxu0 0.0
    %1153 = vmatpush2.msra.mxu0 0.0
    %1154 = vmatprep.subr.mxu0 0.0
    %1155 = vmatpush2.msra.mxu0 0.0
    %1156 = vmatprep.subr.mxu0 0.0
    %1157 = vmatpush2.msra.mxu0 0.0
    %1158 = vmatprep.subr.mxu0 0.0
    %1159 = vmatpush2.msra.mxu0 0.0
    %1160 = vmatprep.subr.mxu0 0.0
    %1161 = vmatpush2.msra.mxu0 0.0
    %1162 = vmatprep.mubr.f32.mxu0 0.0
    %1163 = vmatmul.mubr.f32.gmra.mxu0 %v1093
    %v1164 = vpop.f32.mrf.mxu0
    %v1165 = vadd.f32 %v1090, %v1164
    %v1166 = vpop.f32.mrf.mxu0
    %1167 = vmatprep.mubr.f32.mxu0 0.0
    %1168 = vmatmul.mubr.f32.gmra.mxu0 %v1096
    %v1169 = vpop.f32.mrf.mxu0
    %v1170 = vadd.f32 %v1090, %v1169
    %v1171 = vpop.f32.mrf.mxu0
    %1172 = vdwg.mxu0
    %v1173 = vld [vmem:[%s9] sm:$0x1]
    %v1174 = vtanh.pop %v1165
    %v1175 = vtanh.pop %v1170
    %v1177 = vlaneseq
    %v1178 = vshrl.u32 %v1177, 7
    %v1179 = vsub.s32 0, %v1178
    %v1180 = vrot.slane %v1173, %v1179
    %v1182 = vmul.f32 %v1180, %v1174
    %v1183 = vmul.f32 %v1180, %v1175
    %v1184 = vsel %vm120, %v1182, -inf
    %v1185 = vsel %vm120, %v1183, -inf
    %v1186 = vmax.f32 %v1184, %v1185
    %1187 = vmax.xlane.f32.xlu0 %v1186
    %v1188 = vpop.xlane.xlu0 %1187
    %v1189 = vrot.slane %v1188, 4
    %v1190 = vmax.f32 %v1188, %v1189
    %v1191 = vrot.slane %v1190, 2
    %v1192 = vmax.f32 %v1190, %v1191
    %v1193 = vrot.slane %v1192, 1
    %v1194 = vmax.f32 %v1192, %v1193
    %s1195 = vtos %v1194
    %v1196 = vstv %s1195
    %v1197 = vsub.f32 %v1182, %v1196
    %v1198 = vsub.f32 %v1183, %v1196
    %v1199 = vmul.f32 %v1197, 1.442695
    %v1200 = vpow.pop %v1199
    %v1201 = vmul.f32 %v1198, 1.442695
    %v1202 = vpow.pop %v1201
    %v1204 = vrot.slane %v1200, 4
    %v1206 = vadd.f32 %v1200, %v1204
    %v1207 = vadd.f32 %v1206, %v1202
    %v1209 = vrot.slane %v1202, 4
    %v1211 = vadd.f32 %v1207, %v1209
    %v1212 = vrcp.pop %v1211
    %v1213 = vmul.f32 %v1200, %v1212
    %v1215 = vrot.slane %v1212, 4
    %v1217 = vmul.f32 %v1200, %v1215
    %v1218 = vmul.f32 %v1202, %v1212
    %v1219 = vmul.f32 %v1202, %v1215
    %v1221 = vrot.slane %v1217, 4
    %1222 = vrot.lane.b32.xlu0 %v1221, 32
    %v1223 = vpop.permute.xlu0 %1222
    %1226 = vrot.lane.b32.xlu0 %v1218, 64
    %v1227 = vpop.permute.xlu0 %1226
    %v1230 = vrot.slane %v1219, 4
    %1231 = vrot.lane.b32.xlu0 %v1230, 96
    %v1232 = vpop.permute.xlu0 %1231
    %v1234 = vsel %vm120, %v1213, %v1223
    %vm1235 = vcmask 523264
    %v1236 = vsel %vm1235, %v1234, %v1227
    %vm1237 = vcmask 785408
    %v1238 = vsel %vm1237, %v1236, %v1232
    %1239 = vst [vmem:[#allocation12] sm:$0xf] %v1238
    %v1240 = vlaneseq
    %v1241 = vshrl.u32 %v1240, 7
    %v1242 = vsub.s32 0, %v1241
    %v1243 = vrot.slane %v1057, %v1242
    %v1244 = vmul.f32 %v1213, %v1243
    %v1245 = vlaneseq
    %v1246 = vshrl.u32 %v1245, 7
    %v1247 = vsub.s32 1, %v1246
    %v1248 = vrot.slane %v1057, %v1247
    %v1249 = vmul.f32 %v1217, %v1248
    %v1251 = vrot.slane %v1249, 4
    %v1253 = vadd.f32 %v1244, %v1251
    %v1254 = vlaneseq
    %v1255 = vshrl.u32 %v1254, 7
    %v1256 = vsub.s32 2, %v1255
    %v1257 = vrot.slane %v1057, %v1256
    %v1258 = vmul.f32 %v1218, %v1257
    %v1259 = vadd.f32 %v1253, %v1258
    %v1260 = vlaneseq
    %v1261 = vshrl.u32 %v1260, 7
    %v1262 = vsub.s32 3, %v1261
    %v1263 = vrot.slane %v1057, %v1262
    %v1264 = vmul.f32 %v1219, %v1263
    %v1266 = vrot.slane %v1264, 4
    %v1268 = vadd.f32 %v1259, %v1266
    %v1269 = vlaneseq
    %v1270 = vshrl.u32 %v1269, 7
    %v1271 = vsub.s32 4, %v1270
    %v1272 = vrot.slane %v1064, %v1271
    %v1273 = vmul.f32 %v1213, %v1272
    %v1274 = vlaneseq
    %v1275 = vshrl.u32 %v1274, 7
    %v1276 = vsub.s32 5, %v1275
    %v1277 = vrot.slane %v1064, %v1276
    %v1278 = vmul.f32 %v1217, %v1277
    %v1280 = vrot.slane %v1278, 4
    %v1282 = vadd.f32 %v1273, %v1280
    %v1283 = vlaneseq
    %v1284 = vshrl.u32 %v1283, 7
    %v1285 = vsub.s32 6, %v1284
    %v1286 = vrot.slane %v1064, %v1285
    %v1287 = vmul.f32 %v1218, %v1286
    %v1288 = vadd.f32 %v1282, %v1287
    %v1289 = vlaneseq
    %v1290 = vshrl.u32 %v1289, 7
    %v1291 = vsub.s32 7, %v1290
    %v1292 = vrot.slane %v1064, %v1291
    %v1293 = vmul.f32 %v1219, %v1292
    %v1295 = vrot.slane %v1293, 4
    %v1297 = vadd.f32 %v1288, %v1295
    %v1298 = vlaneseq
    %v1299 = vshrl.u32 %v1298, 7
    %v1300 = vsub.s32 0, %v1299
    %v1301 = vrot.slane %v1069, %v1300
    %v1302 = vmul.f32 %v1213, %v1301
    %v1303 = vlaneseq
    %v1304 = vshrl.u32 %v1303, 7
    %v1305 = vsub.s32 1, %v1304
    %v1306 = vrot.slane %v1069, %v1305
    %v1307 = vmul.f32 %v1217, %v1306
    %v1309 = vrot.slane %v1307, 4
    %v1311 = vadd.f32 %v1302, %v1309
    %v1312 = vlaneseq
    %v1313 = vshrl.u32 %v1312, 7
    %v1314 = vsub.s32 2, %v1313
    %v1315 = vrot.slane %v1069, %v1314
    %v1316 = vmul.f32 %v1218, %v1315
    %v1317 = vadd.f32 %v1311, %v1316
    %v1318 = vlaneseq
    %v1319 = vshrl.u32 %v1318, 7
    %v1320 = vsub.s32 3, %v1319
    %v1321 = vrot.slane %v1069, %v1320
    %v1322 = vmul.f32 %v1219, %v1321
    %v1324 = vrot.slane %v1322, 4
    %v1326 = vadd.f32 %v1317, %v1324
    %v1327 = vlaneseq
    %v1328 = vshrl.u32 %v1327, 7
    %v1329 = vsub.s32 4, %v1328
    %v1330 = vrot.slane %v1077, %v1329
    %v1331 = vmul.f32 %v1213, %v1330
    %v1332 = vlaneseq
    %v1333 = vshrl.u32 %v1332, 7
    %v1334 = vsub.s32 5, %v1333
    %v1335 = vrot.slane %v1077, %v1334
    %v1336 = vmul.f32 %v1217, %v1335
    %v1338 = vrot.slane %v1336, 4
    %v1340 = vadd.f32 %v1331, %v1338
    %v1341 = vlaneseq
    %v1342 = vshrl.u32 %v1341, 7
    %v1343 = vsub.s32 6, %v1342
    %v1344 = vrot.slane %v1077, %v1343
    %v1345 = vmul.f32 %v1218, %v1344
    %v1346 = vadd.f32 %v1340, %v1345
    %v1347 = vlaneseq
    %v1348 = vshrl.u32 %v1347, 7
    %v1349 = vsub.s32 7, %v1348
    %v1350 = vrot.slane %v1077, %v1349
    %v1351 = vmul.f32 %v1219, %v1350
    %v1353 = vrot.slane %v1351, 4
    %v1355 = vadd.f32 %v1346, %v1353
    %1357 = vrot.lane.b32.xlu0 %v1297, 32
    %v1358 = vpop.permute.xlu0 %1357
    %1361 = vrot.lane.b32.xlu0 %v1326, 64
    %v1362 = vpop.permute.xlu0 %1361
    %1365 = vrot.lane.b32.xlu0 %v1355, 96
    %v1366 = vpop.permute.xlu0 %1365
    %v1368 = vsel %vm120, %v1268, %v1358
    %v1369 = vsel %vm1235, %v1368, %v1362
    %v1370 = vsel %vm1237, %v1369, %v1366
    %1371 = vst [vmem:[#allocation11] sm:$0xf] %v1370
    // Predicated region
    $region62: #{tpu_custom_call.1} parent=1 // pred_check
      _
    $region63: #{tpu_custom_call.1} parent=1 // pred_check_branch
      %1373 = sbr.rel (0) target = $region65
    $region64: #{tpu_custom_call.1} parent=1 // pred_region
      %s1375 = ssub.s32 64, 64
      %1376 = vsyncadd [#allocation4], %s1375
      %s1378 = sshll.u32 [#allocation11], 4
      %s1379 = int_to_ptr.vmem [resolvable:$true] %s1378
      %1381 = dma.vmem_to_hbm [thread:$0]  %s1379, 64, %s10, [#allocation4]
    $region65: #{tpu_custom_call.1} parent=1 // pred_fallthru
      _
    // Predicated region
    $region66: #{tpu_custom_call.1} parent=1 // pred_check
      _
    $region67: #{tpu_custom_call.1} parent=1 // pred_check_branch
      %1383 = sbr.rel (0) target = $region69
    $region68: #{tpu_custom_call.1} parent=1 // pred_region
      %s1385 = ssub.s32 64, 64
      %1386 = vsyncadd [#allocation13], %s1385
      %s1388 = sshll.u32 [#allocation12], 4
      %s1389 = int_to_ptr.vmem [resolvable:$true] %s1388
      %1391 = dma.vmem_to_hbm [thread:$0]  %s1389, 64, %s11, [#allocation13]
    $region69: #{tpu_custom_call.1} parent=1 // pred_fallthru
      _
    // Predicated region
    $region70: #{tpu_custom_call.1} parent=1 // pred_check
      _
    $region71: #{tpu_custom_call.1} parent=1 // pred_check_branch
      %1393 = sbr.rel (0) target = $region73
    $region72: #{tpu_custom_call.1} parent=1 // pred_region
      %1394 = dma.done [#allocation4], 64
    $region73: #{tpu_custom_call.1} parent=1 // pred_fallthru
      _
    // Predicated region
    $region74: #{tpu_custom_call.1} parent=1 // pred_check
      _
    $region75: #{tpu_custom_call.1} parent=1 // pred_check_branch
      %1396 = sbr.rel (0) target = $region77
    $region76: #{tpu_custom_call.1} parent=1 // pred_region
      %1397 = dma.done [#allocation13], 64
    $region77: #{tpu_custom_call.1} parent=1 // pred_fallthru
      _
    %1398 = vsyncpa [#allocation3], 1
    %1399 = vsyncpa [#allocation6], 1
    %1400 = vsyncpa [#allocation9], 1
    %1401 = vsyncpa [#allocation4], 1
    %1402 = vsyncpa [#allocation13], 1

</llo_original>
